<compile_context>
chip_gen: v7x
topology: tpu7x:2x2x1
jax: 0.10.0
libtpu: 0.0.40
codegen_flags: <defaults>
</compile_context>

<pallas_src>
import functools

import jax
import jax.numpy as jnp
from jax.experimental import pallas as pl
from jax.experimental.pallas import tpu as pltpu


def _fold_w_groups(v, w_out, cout):
    """(1, w_out*cout) -> (1, cout): sum over the w lane-groups (static slices)."""
    acc = v[:, 0:cout]
    for g in range(1, w_out):
        acc = acc + v[:, g * cout:(g + 1) * cout]
    return acc


def _tile_lanes(v, w_out):
    """(1, cout) -> (1, w_out*cout): repeat a per-channel vector over the w groups."""
    return jnp.concatenate([v] * w_out, axis=-1)


def _fused_kernel(x_ref, w_ref, b_ref, g_ref, beta_ref, o_ref,
                  y_scr, sum_scr, scale_scr, shift_scr, *,
                  n, k, h_out, w_out, cout, pool, eps):
    # x_ref    : (1, H+2p, (W+2p)*Cin)   zero-padded input, W & Cin folded on lanes
    # w_ref    : (K, (W+2p)*Cin, W*Cout) per-row block-Toeplitz conv weights
    # b_ref    : (1, W*Cout)             conv bias tiled over the w groups
    # g_ref    : (1, Cout)  BN gamma     beta_ref : (1, Cout)  BN beta
    # o_ref    : (1, Hp, Wp*Cout)        pooled output block (written in phase 1)
    # y_scr    : (N, H, W*Cout) f32      persistent VMEM conv activations
    # sum_scr / scale_scr / shift_scr : (1, W*Cout) f32 persistent stats / affine
    phase = pl.program_id(0)        # 0 = conv + stats, 1 = BN/ReLU/pool
    b = pl.program_id(1)            # batch index
    hp = h_out // pool
    wp = w_out // pool
    chunk = wp * cout

    @pl.when(phase == 0)
    def _conv_phase():
        # Conv as K row-shifted matmuls -> lane-dense (H, W*Cout) result.
        y = jnp.dot(x_ref[0, pl.ds(0, h_out), :], w_ref[0],
                    preferred_element_type=jnp.float32)
        for di in range(1, k):
            y += jnp.dot(x_ref[0, pl.ds(di, h_out), :], w_ref[di],
                         preferred_element_type=jnp.float32)
        y = y + b_ref[...]
        y_scr[b] = y

        @pl.when(b == 0)
        def _init():
            sum_scr[...] = jnp.zeros_like(sum_scr)

        sum_scr[...] += jnp.sum(y, axis=0, keepdims=True)   # sublane reduce only

    @pl.when(jnp.logical_and(phase == 1, b == 0))
    def _stats_phase():
        # BatchNorm2d training-mode statistics.  Centered second pass over the
        # VMEM-resident activation (exact, no sum-of-squares cancellation).
        count = jnp.float32(n * h_out * w_out)
        mean_c = _fold_w_groups(sum_scr[...], w_out, cout) / count      # (1,Cout)
        mean_l = _tile_lanes(mean_c, w_out)                             # (1,W*Cout)
        csum = jnp.zeros_like(sum_scr[...])
        for bb in range(n):
            d = y_scr[bb] - mean_l
            csum = csum + jnp.sum(d * d, axis=0, keepdims=True)
        var_c = _fold_w_groups(csum, w_out, cout) / count               # biased var
        scale_c = g_ref[...] * jax.lax.rsqrt(var_c + eps)
        shift_c = beta_ref[...] - mean_c * scale_c
        scale_scr[...] = _tile_lanes(scale_c, w_out)
        shift_scr[...] = _tile_lanes(shift_c, w_out)

    @pl.when(phase == 1)
    def _pool_phase():
        # BN affine must precede the max (scale may be negative); ReLU commutes
        # with max so it is applied once at the end.  Broadcasts hoisted.
        scale_b = jnp.broadcast_to(scale_scr[...], (hp, w_out * cout))
        shift_b = jnp.broadcast_to(shift_scr[...], (hp, w_out * cout))
        m = None
        for r in range(pool):        # H direction: sublane-strided rows r, r+pool, ...
            v = y_scr[b, pl.ds(r, hp, stride=pool), :] * scale_b + shift_b
            m = v if m is None else jnp.maximum(m, v)
        # W direction: lanes are de-interleaved by (w % pool), so pool partners
        # sit in `pool` contiguous chunks of wp*cout lanes -> plain slab maxes.
        mw = m[:, 0:chunk]
        for r in range(1, pool):
            mw = jnp.maximum(mw, m[:, r * chunk:(r + 1) * chunk])
        o_ref[0] = jnp.maximum(mw, 0.0).astype(o_ref.dtype)


@functools.partial(jax.jit, static_argnames=("stride", "pooling", "eps"))
def conv_2d_forward(x_nchw, conv_w, conv_b, bn_gamma, bn_beta, *,
                    stride=1, pooling=2, eps=1e-5):
    """Fused Conv2d + BatchNorm2d (training stats) + ReLU + MaxPool2d, NCHW."""
    assert stride == 1, "kernel written for the module default stride=1"
    n, cin, h, w = x_nchw.shape
    cout, cin_w, kh, kw = conv_w.shape
    assert cin_w == cin and kh == kw
    k = kh
    pad = k // 2
    h_out = (h + 2 * pad - k) // stride + 1
    w_out = (w + 2 * pad - k) // stride + 1
    assert h_out % pooling == 0 and w_out % pooling == 0
    hp, wp = h_out // pooling, w_out // pooling
    wpad_cin = (w + 2 * pad) * cin

    # Fused path keeps the full conv activation resident in VMEM.  Budget it
    # conservatively for v7x (64 MiB physical VMEM, half of v5e/v6e).
    # TODO(synk): add a two-pass HBM fallback with H row-band halo tiling for
    # activation sizes that do not fit the VMEM budget.
    y_bytes = n * h_out * w_out * cout * 4
    assert y_bytes <= 24 * 1024 * 1024, "activation too large for fused VMEM path"

    # ---- glue (plain JAX, traced under jit): layout + Toeplitz weights ------
    # TODO(synk): the NCHW<->NHWC transpose is still a separate XLA op (one
    # extra HBM pass over x); folding it into the kernel would need a
    # gather-style index_map and is left out here.
    x_nhwc = jnp.transpose(x_nchw, (0, 2, 3, 1))
    x_pad = jnp.pad(x_nhwc, ((0, 0), (pad, pad), (pad, pad), (0, 0)))
    x_pck = x_pad.reshape(n, h + 2 * pad, wpad_cin)        # fold W, Cin onto lanes

    # Per-row block-Toeplitz weight planes:
    #   y[h, lane(w,c)] = sum_di  x_pck[h+di, :] @ w_toe[di]
    # Output lanes are de-interleaved by (w % pooling) so the kernel's
    # W-direction pooling is a max of contiguous lane chunks.
    w_hwio = jnp.transpose(conv_w, (2, 3, 1, 0)).astype(x_nchw.dtype)  # (K,K,Cin,Cout)
    w_toe = jnp.zeros((k, wpad_cin, w_out * cout), x_nchw.dtype)
    for dj in range(k):
        for ww in range(w_out):
            lane0 = (ww % pooling) * (wp * cout) + (ww // pooling) * cout
            row0 = (ww + dj) * cin
            w_toe = w_toe.at[:, row0:row0 + cin, lane0:lane0 + cout].set(w_hwio[:, dj])

    b_lane = jnp.tile(conv_b.astype(jnp.float32), w_out).reshape(1, w_out * cout)
    gamma2 = bn_gamma.astype(jnp.float32).reshape(1, cout)
    beta2 = bn_beta.astype(jnp.float32).reshape(1, cout)
    # TODO(synk): nn.BatchNorm2d running_mean/running_var buffer updates are
    # module state side effects and are not modeled (forward output unaffected).

    flops = n * k * 2 * h_out * wpad_cin * (w_out * cout)
    bytes_acc = int(x_pck.size * jnp.dtype(x_pck.dtype).itemsize
                    + w_toe.size * jnp.dtype(w_toe.dtype).itemsize
                    + (b_lane.size + gamma2.size + beta2.size) * 4
                    + n * hp * wp * cout * jnp.dtype(x_nchw.dtype).itemsize)

    kern = functools.partial(_fused_kernel, n=n, k=k, h_out=h_out, w_out=w_out,
                             cout=cout, pool=pooling, eps=eps)
    out_pck = pl.pallas_call(
        kern,
        grid=(2, n),                               # (phase: conv | bn/pool, batch)
        in_specs=[
            pl.BlockSpec((1, h + 2 * pad, wpad_cin),
                         lambda p, i: (i * (1 - p), 0, 0)),   # only used in phase 0
            pl.BlockSpec((k, wpad_cin, w_out * cout), lambda p, i: (0, 0, 0)),
            pl.BlockSpec((1, w_out * cout), lambda p, i: (0, 0)),
            pl.BlockSpec((1, cout), lambda p, i: (0, 0)),
            pl.BlockSpec((1, cout), lambda p, i: (0, 0)),
        ],
        out_specs=pl.BlockSpec((1, hp, wp * cout),
                               lambda p, i: (p * i, 0, 0)),   # written in phase 1
        out_shape=jax.ShapeDtypeStruct((n, hp, wp * cout), x_nchw.dtype),
        scratch_shapes=[
            pltpu.VMEM((n, h_out, w_out * cout), jnp.float32),  # resident conv act.
            pltpu.VMEM((1, w_out * cout), jnp.float32),         # per-lane sums
            pltpu.VMEM((1, w_out * cout), jnp.float32),         # BN scale (lane-tiled)
            pltpu.VMEM((1, w_out * cout), jnp.float32),         # BN shift (lane-tiled)
        ],
        compiler_params=pltpu.CompilerParams(
            # Phase 1 depends on all of phase 0 (VMEM scratch + batch stats),
            # so the grid must run sequentially.
            # TODO(synk): on multi-TensorCore chips (v7x) privatize the stats
            # per core and split the batch across cores instead.
            dimension_semantics=("arbitrary", "arbitrary"),
            vmem_limit_bytes=32 * 1024 * 1024),
        cost_estimate=pl.CostEstimate(flops=flops, transcendentals=cout,
                                      bytes_accessed=bytes_acc),
    )(x_pck, w_toe, b_lane, gamma2, beta2)

    out = out_pck.reshape(n, hp, wp, cout)
    return jnp.transpose(out, (0, 3, 1, 2))        # back to NCHW


def _reference(x, conv_w, conv_b, gamma, beta, *, pooling=2, eps=1e-5):
    """Pure-JAX reference matching PyTorch training-mode forward semantics."""
    pad = conv_w.shape[-1] // 2
    y = jax.lax.conv_general_dilated(
        x, conv_w, window_strides=(1, 1), padding=[(pad, pad), (pad, pad)],
        dimension_numbers=("NCHW", "OIHW", "NCHW"))
    y = y + conv_b[None, :, None, None]
    mean = y.mean(axis=(0, 2, 3), keepdims=True)
    var = jnp.square(y - mean).mean(axis=(0, 2, 3), keepdims=True)
    y = (y - mean) / jnp.sqrt(var + eps)
    y = y * gamma[None, :, None, None] + beta[None, :, None, None]
    y = jnp.maximum(y, 0.0)
    n, c, hh, ww = y.shape
    hp, wp = hh // pooling, ww // pooling
    y = y[:, :, :hp * pooling, :wp * pooling]
    y = y.reshape(n, c, hp, pooling, wp, pooling)
    return y.max(axis=(3, 5))


if __name__ == "__main__":
    key = jax.random.PRNGKey(0)
    kx, kw_, kb, kg, kbe = jax.random.split(key, 5)

    # Small shapes consistent with the module (batch=2, C_in=4, C_out=8, 16x16).
    N, CIN, COUT, H, W, K = 2, 4, 8, 16, 16, 3
    x = jax.random.normal(kx, (N, CIN, H, W), jnp.float32)                 # NCHW
    conv_w = 0.3 * jax.random.normal(kw_, (COUT, CIN, K, K), jnp.float32)  # (O,I,KH,KW)
    conv_b = 0.1 * jax.random.normal(kb, (COUT,), jnp.float32)
    bn_gamma = 1.0 + 0.1 * jax.random.normal(kg, (COUT,), jnp.float32)
    bn_beta = 0.1 * jax.random.normal(kbe, (COUT,), jnp.float32)

    out = conv_2d_forward(x, conv_w, conv_b, bn_gamma, bn_beta, pooling=2)
    out = jax.block_until_ready(out)

    ref = _reference(x, conv_w, conv_b, bn_gamma, bn_beta, pooling=2)
    assert out.shape == ref.shape == (N, COUT, H // 2, W // 2), (out.shape, ref.shape)
    max_err = float(jnp.max(jnp.abs(out - ref)))
    assert max_err < 5e-2, f"mismatch vs reference: {max_err}"

    print("KERNEL_OK")
</pallas_src>

<mosaic_0001>
module attributes {stable_mosaic.version = 11 : i64} {
  func.func @_fused_kernel(%arg0: i32, %arg1: i32, %arg2: memref<1x18x72xf32, #tpu.memory_space<vmem>>, %arg3: memref<3x72x128xf32, #tpu.memory_space<vmem>>, %arg4: memref<1x128xf32, #tpu.memory_space<vmem>>, %arg5: memref<1x8xf32, #tpu.memory_space<vmem>>, %arg6: memref<1x8xf32, #tpu.memory_space<vmem>>, %arg7: memref<1x8x64xf32, #tpu.memory_space<vmem>>, %arg8: memref<2x16x128xf32, #tpu.memory_space<vmem>>, %arg9: memref<1x128xf32, #tpu.memory_space<vmem>>, %arg10: memref<1x128xf32, #tpu.memory_space<vmem>>, %arg11: memref<1x128xf32, #tpu.memory_space<vmem>>) attributes {dimension_semantics = [#tpu.dimension_semantics<arbitrary>, #tpu.dimension_semantics<arbitrary>], iteration_bounds = array<i64: 2, 2>, scalar_prefetch = 0 : i64, scratch_operands = 4 : i64, tpu.core_type = #tpu.core_type<tc>, window_params = [{transform_indices = @transform_0, window_bounds = array<i64: 1, 18, 72>}, {pipeline_mode = #tpu.pipeline_mode<synchronous>, transform_indices = @transform_1, window_bounds = array<i64: 3, 72, 128>}, {pipeline_mode = #tpu.pipeline_mode<synchronous>, transform_indices = @transform_2, window_bounds = array<i64: 1, 128>}, {pipeline_mode = #tpu.pipeline_mode<synchronous>, transform_indices = @transform_3, window_bounds = array<i64: 1, 8>}, {pipeline_mode = #tpu.pipeline_mode<synchronous>, transform_indices = @transform_4, window_bounds = array<i64: 1, 8>}, {transform_indices = @transform_5, window_bounds = array<i64: 1, 8, 64>}]} {
    %c0_i32 = arith.constant 0 : i32
    %0 = arith.cmpi eq, %arg0, %c0_i32 : i32
    %1 = arith.extui %0 : i1 to i32
    %c0_i32_0 = arith.constant 0 : i32
    %2 = arith.cmpi ne, %1, %c0_i32_0 : i32
    scf.if %2 {
      %c0 = arith.constant 0 : index
      %c0_5 = arith.constant 0 : index
      %c0_6 = arith.constant 0 : index
      %11 = vector.load %arg2[%c0, %c0_5, %c0_6] : memref<1x18x72xf32, #tpu.memory_space<vmem>>, vector<1x16x72xf32>
      %12 = vector.shape_cast %11 : vector<1x16x72xf32> to vector<16x72xf32>
      %c0_7 = arith.constant 0 : index
      %c0_8 = arith.constant 0 : index
      %c0_9 = arith.constant 0 : index
      %13 = vector.load %arg3[%c0_7, %c0_8, %c0_9] : memref<3x72x128xf32, #tpu.memory_space<vmem>>, vector<1x72x128xf32>
      %14 = vector.shape_cast %13 : vector<1x72x128xf32> to vector<72x128xf32>
      %cst = arith.constant dense<0.000000e+00> : vector<16x128xf32>
      %15 = tpu.matmul %12, %14, %cst {dimension_numbers = #tpu.dot_dimension_numbers<[1], [0], [0], [1], [0, 0, 1, 1], [], []>} : vector<16x72xf32>, vector<72x128xf32>, vector<16x128xf32> -> vector<16x128xf32>
      %c0_10 = arith.constant 0 : index
      %c1 = arith.constant 1 : index
      %c0_11 = arith.constant 0 : index
      %16 = vector.load %arg2[%c0_10, %c1, %c0_11] : memref<1x18x72xf32, #tpu.memory_space<vmem>>, vector<1x16x72xf32>
      %17 = vector.shape_cast %16 : vector<1x16x72xf32> to vector<16x72xf32>
      %c1_12 = arith.constant 1 : index
      %c0_13 = arith.constant 0 : index
      %c0_14 = arith.constant 0 : index
      %18 = vector.load %arg3[%c1_12, %c0_13, %c0_14] : memref<3x72x128xf32, #tpu.memory_space<vmem>>, vector<1x72x128xf32>
      %19 = vector.shape_cast %18 : vector<1x72x128xf32> to vector<72x128xf32>
      %cst_15 = arith.constant dense<0.000000e+00> : vector<16x128xf32>
      %20 = tpu.matmul %17, %19, %cst_15 {dimension_numbers = #tpu.dot_dimension_numbers<[1], [0], [0], [1], [0, 0, 1, 1], [], []>} : vector<16x72xf32>, vector<72x128xf32>, vector<16x128xf32> -> vector<16x128xf32>
      %21 = arith.addf %15, %20 : vector<16x128xf32>
      %c0_16 = arith.constant 0 : index
      %c2 = arith.constant 2 : index
      %c0_17 = arith.constant 0 : index
      %22 = vector.load %arg2[%c0_16, %c2, %c0_17] : memref<1x18x72xf32, #tpu.memory_space<vmem>>, vector<1x16x72xf32>
      %23 = vector.shape_cast %22 : vector<1x16x72xf32> to vector<16x72xf32>
      %c2_18 = arith.constant 2 : index
      %c0_19 = arith.constant 0 : index
      %c0_20 = arith.constant 0 : index
      %24 = vector.load %arg3[%c2_18, %c0_19, %c0_20] : memref<3x72x128xf32, #tpu.memory_space<vmem>>, vector<1x72x128xf32>
      %25 = vector.shape_cast %24 : vector<1x72x128xf32> to vector<72x128xf32>
      %cst_21 = arith.constant dense<0.000000e+00> : vector<16x128xf32>
      %26 = tpu.matmul %23, %25, %cst_21 {dimension_numbers = #tpu.dot_dimension_numbers<[1], [0], [0], [1], [0, 0, 1, 1], [], []>} : vector<16x72xf32>, vector<72x128xf32>, vector<16x128xf32> -> vector<16x128xf32>
      %27 = arith.addf %21, %26 : vector<16x128xf32>
      %c0_22 = arith.constant 0 : index
      %c0_23 = arith.constant 0 : index
      %28 = vector.load %arg4[%c0_22, %c0_23] : memref<1x128xf32, #tpu.memory_space<vmem>>, vector<1x128xf32>
      %29 = vector.broadcast %28 : vector<1x128xf32> to vector<16x128xf32>
      %30 = arith.addf %27, %29 : vector<16x128xf32>
      %31 = arith.index_cast %arg1 : i32 to index
      %c0_24 = arith.constant 0 : index
      %c0_25 = arith.constant 0 : index
      %32 = vector.load %arg8[%31, %c0_24, %c0_25] : memref<2x16x128xf32, #tpu.memory_space<vmem>>, vector<1x16x128xf32>
      %33 = vector.shape_cast %32 : vector<1x16x128xf32> to vector<16x128xf32>
      %34 = vector.shape_cast %30 : vector<16x128xf32> to vector<1x16x128xf32>
      tpu.vector_store %arg8[%31, %c0_24, %c0_25], %34 {strides = array<i32>} : memref<2x16x128xf32, #tpu.memory_space<vmem>>, vector<1x16x128xf32>,
      %c0_i32_26 = arith.constant 0 : i32
      %35 = arith.cmpi eq, %arg1, %c0_i32_26 : i32
      %36 = arith.extui %35 : i1 to i32
      %c0_i32_27 = arith.constant 0 : i32
      %37 = arith.cmpi ne, %36, %c0_i32_27 : i32
      scf.if %37 {
        %cst_33 = arith.constant 0.000000e+00 : f32
        %43 = vector.broadcast %cst_33 : f32 to vector<1x128xf32>
        %c0_34 = arith.constant 0 : index
        %c0_35 = arith.constant 0 : index
        %44 = vector.load %arg9[%c0_34, %c0_35] : memref<1x128xf32, #tpu.memory_space<vmem>>, vector<1x128xf32>
        tpu.vector_store %arg9[%c0_34, %c0_35], %43 {strides = array<i32>} : memref<1x128xf32, #tpu.memory_space<vmem>>, vector<1x128xf32>,
      } else {
      }
      %c0_28 = arith.constant 0 : index
      %c0_29 = arith.constant 0 : index
      %38 = vector.load %arg9[%c0_28, %c0_29] : memref<1x128xf32, #tpu.memory_space<vmem>>, vector<1x128xf32>
      %cst_30 = arith.constant dense<0.000000e+00> : vector<128xf32>
      %39 = vector.multi_reduction <add>, %30, %cst_30 [0] : vector<16x128xf32> to vector<128xf32>
      %40 = vector.shape_cast %39 : vector<128xf32> to vector<1x128xf32>
      %41 = arith.addf %38, %40 : vector<1x128xf32>
      %c0_31 = arith.constant 0 : index
      %c0_32 = arith.constant 0 : index
      %42 = vector.load %arg9[%c0_31, %c0_32] : memref<1x128xf32, #tpu.memory_space<vmem>>, vector<1x128xf32>
      tpu.vector_store %arg9[%c0_31, %c0_32], %41 {strides = array<i32>} : memref<1x128xf32, #tpu.memory_space<vmem>>, vector<1x128xf32>,
    } else {
    }
    %c1_i32 = arith.constant 1 : i32
    %3 = arith.cmpi eq, %arg0, %c1_i32 : i32
    %c0_i32_1 = arith.constant 0 : i32
    %4 = arith.cmpi eq, %arg1, %c0_i32_1 : i32
    %5 = arith.andi %3, %4 : i1
    %6 = arith.extui %5 : i1 to i32
    %c0_i32_2 = arith.constant 0 : i32
    %7 = arith.cmpi ne, %6, %c0_i32_2 : i32
    scf.if %7 {
      %c0 = arith.constant 0 : index
      %c0_5 = arith.constant 0 : index
      %11 = vector.load %arg9[%c0, %c0_5] : memref<1x128xf32, #tpu.memory_space<vmem>>, vector<1x128xf32>
      %12 = vector.extract_strided_slice %11 {offsets = [0, 0], sizes = [1, 8], strides = [1, 1]} : vector<1x128xf32> to vector<1x8xf32>
      %13 = vector.extract_strided_slice %11 {offsets = [0, 8], sizes = [1, 8], strides = [1, 1]} : vector<1x128xf32> to vector<1x8xf32>
      %14 = arith.addf %12, %13 : vector<1x8xf32>
      %15 = vector.extract_strided_slice %11 {offsets = [0, 16], sizes = [1, 8], strides = [1, 1]} : vector<1x128xf32> to vector<1x8xf32>
      %16 = arith.addf %14, %15 : vector<1x8xf32>
      %17 = vector.extract_strided_slice %11 {offsets = [0, 24], sizes = [1, 8], strides = [1, 1]} : vector<1x128xf32> to vector<1x8xf32>
      %18 = arith.addf %16, %17 : vector<1x8xf32>
      %19 = vector.extract_strided_slice %11 {offsets = [0, 32], sizes = [1, 8], strides = [1, 1]} : vector<1x128xf32> to vector<1x8xf32>
      %20 = arith.addf %18, %19 : vector<1x8xf32>
      %21 = vector.extract_strided_slice %11 {offsets = [0, 40], sizes = [1, 8], strides = [1, 1]} : vector<1x128xf32> to vector<1x8xf32>
      %22 = arith.addf %20, %21 : vector<1x8xf32>
      %23 = vector.extract_strided_slice %11 {offsets = [0, 48], sizes = [1, 8], strides = [1, 1]} : vector<1x128xf32> to vector<1x8xf32>
      %24 = arith.addf %22, %23 : vector<1x8xf32>
      %25 = vector.extract_strided_slice %11 {offsets = [0, 56], sizes = [1, 8], strides = [1, 1]} : vector<1x128xf32> to vector<1x8xf32>
      %26 = arith.addf %24, %25 : vector<1x8xf32>
      %27 = vector.extract_strided_slice %11 {offsets = [0, 64], sizes = [1, 8], strides = [1, 1]} : vector<1x128xf32> to vector<1x8xf32>
      %28 = arith.addf %26, %27 : vector<1x8xf32>
      %29 = vector.extract_strided_slice %11 {offsets = [0, 72], sizes = [1, 8], strides = [1, 1]} : vector<1x128xf32> to vector<1x8xf32>
      %30 = arith.addf %28, %29 : vector<1x8xf32>
      %31 = vector.extract_strided_slice %11 {offsets = [0, 80], sizes = [1, 8], strides = [1, 1]} : vector<1x128xf32> to vector<1x8xf32>
      %32 = arith.addf %30, %31 : vector<1x8xf32>
      %33 = vector.extract_strided_slice %11 {offsets = [0, 88], sizes = [1, 8], strides = [1, 1]} : vector<1x128xf32> to vector<1x8xf32>
      %34 = arith.addf %32, %33 : vector<1x8xf32>
      %35 = vector.extract_strided_slice %11 {offsets = [0, 96], sizes = [1, 8], strides = [1, 1]} : vector<1x128xf32> to vector<1x8xf32>
      %36 = arith.addf %34, %35 : vector<1x8xf32>
      %37 = vector.extract_strided_slice %11 {offsets = [0, 104], sizes = [1, 8], strides = [1, 1]} : vector<1x128xf32> to vector<1x8xf32>
      %38 = arith.addf %36, %37 : vector<1x8xf32>
      %39 = vector.extract_strided_slice %11 {offsets = [0, 112], sizes = [1, 8], strides = [1, 1]} : vector<1x128xf32> to vector<1x8xf32>
      %40 = arith.addf %38, %39 : vector<1x8xf32>
      %41 = vector.extract_strided_slice %11 {offsets = [0, 120], sizes = [1, 8], strides = [1, 1]} : vector<1x128xf32> to vector<1x8xf32>
      %42 = arith.addf %40, %41 : vector<1x8xf32>
      %cst = arith.constant 5.120000e+02 : f32
      %43 = vector.broadcast %cst : f32 to vector<1x8xf32>
      %44 = arith.divf %42, %43 : vector<1x8xf32>
      %45 = tpu.concatenate %44, %44, %44, %44, %44, %44, %44, %44, %44, %44, %44, %44, %44, %44, %44, %44 in 1 : vector<1x8xf32>, vector<1x8xf32>, vector<1x8xf32>, vector<1x8xf32>, vector<1x8xf32>, vector<1x8xf32>, vector<1x8xf32>, vector<1x8xf32>, vector<1x8xf32>, vector<1x8xf32>, vector<1x8xf32>, vector<1x8xf32>, vector<1x8xf32>, vector<1x8xf32>, vector<1x8xf32>, vector<1x8xf32> -> vector<1x128xf32>
      %cst_6 = arith.constant 0.000000e+00 : f32
      %46 = vector.broadcast %cst_6 : f32 to vector<1x128xf32>
      %c0_7 = arith.constant 0 : index
      %c0_8 = arith.constant 0 : index
      %c0_9 = arith.constant 0 : index
      %47 = vector.load %arg8[%c0_7, %c0_8, %c0_9] : memref<2x16x128xf32, #tpu.memory_space<vmem>>, vector<1x16x128xf32>
      %48 = vector.shape_cast %47 : vector<1x16x128xf32> to vector<16x128xf32>
      %49 = vector.broadcast %45 : vector<1x128xf32> to vector<16x128xf32>
      %50 = arith.subf %48, %49 : vector<16x128xf32>
      %51 = arith.mulf %50, %50 : vector<16x128xf32>
      %cst_10 = arith.constant dense<0.000000e+00> : vector<128xf32>
      %52 = vector.multi_reduction <add>, %51, %cst_10 [0] : vector<16x128xf32> to vector<128xf32>
      %53 = vector.shape_cast %52 : vector<128xf32> to vector<1x128xf32>
      %54 = arith.addf %46, %53 : vector<1x128xf32>
      %c1 = arith.constant 1 : index
      %c0_11 = arith.constant 0 : index
      %c0_12 = arith.constant 0 : index
      %55 = vector.load %arg8[%c1, %c0_11, %c0_12] : memref<2x16x128xf32, #tpu.memory_space<vmem>>, vector<1x16x128xf32>
      %56 = vector.shape_cast %55 : vector<1x16x128xf32> to vector<16x128xf32>
      %57 = vector.broadcast %45 : vector<1x128xf32> to vector<16x128xf32>
      %58 = arith.subf %56, %57 : vector<16x128xf32>
      %59 = arith.mulf %58, %58 : vector<16x128xf32>
      %cst_13 = arith.constant dense<0.000000e+00> : vector<128xf32>
      %60 = vector.multi_reduction <add>, %59, %cst_13 [0] : vector<16x128xf32> to vector<128xf32>
      %61 = vector.shape_cast %60 : vector<128xf32> to vector<1x128xf32>
      %62 = arith.addf %54, %61 : vector<1x128xf32>
      %63 = vector.extract_strided_slice %62 {offsets = [0, 0], sizes = [1, 8], strides = [1, 1]} : vector<1x128xf32> to vector<1x8xf32>
      %64 = vector.extract_strided_slice %62 {offsets = [0, 8], sizes = [1, 8], strides = [1, 1]} : vector<1x128xf32> to vector<1x8xf32>
      %65 = arith.addf %63, %64 : vector<1x8xf32>
      %66 = vector.extract_strided_slice %62 {offsets = [0, 16], sizes = [1, 8], strides = [1, 1]} : vector<1x128xf32> to vector<1x8xf32>
      %67 = arith.addf %65, %66 : vector<1x8xf32>
      %68 = vector.extract_strided_slice %62 {offsets = [0, 24], sizes = [1, 8], strides = [1, 1]} : vector<1x128xf32> to vector<1x8xf32>
      %69 = arith.addf %67, %68 : vector<1x8xf32>
      %70 = vector.extract_strided_slice %62 {offsets = [0, 32], sizes = [1, 8], strides = [1, 1]} : vector<1x128xf32> to vector<1x8xf32>
      %71 = arith.addf %69, %70 : vector<1x8xf32>
      %72 = vector.extract_strided_slice %62 {offsets = [0, 40], sizes = [1, 8], strides = [1, 1]} : vector<1x128xf32> to vector<1x8xf32>
      %73 = arith.addf %71, %72 : vector<1x8xf32>
      %74 = vector.extract_strided_slice %62 {offsets = [0, 48], sizes = [1, 8], strides = [1, 1]} : vector<1x128xf32> to vector<1x8xf32>
      %75 = arith.addf %73, %74 : vector<1x8xf32>
      %76 = vector.extract_strided_slice %62 {offsets = [0, 56], sizes = [1, 8], strides = [1, 1]} : vector<1x128xf32> to vector<1x8xf32>
      %77 = arith.addf %75, %76 : vector<1x8xf32>
      %78 = vector.extract_strided_slice %62 {offsets = [0, 64], sizes = [1, 8], strides = [1, 1]} : vector<1x128xf32> to vector<1x8xf32>
      %79 = arith.addf %77, %78 : vector<1x8xf32>
      %80 = vector.extract_strided_slice %62 {offsets = [0, 72], sizes = [1, 8], strides = [1, 1]} : vector<1x128xf32> to vector<1x8xf32>
      %81 = arith.addf %79, %80 : vector<1x8xf32>
      %82 = vector.extract_strided_slice %62 {offsets = [0, 80], sizes = [1, 8], strides = [1, 1]} : vector<1x128xf32> to vector<1x8xf32>
      %83 = arith.addf %81, %82 : vector<1x8xf32>
      %84 = vector.extract_strided_slice %62 {offsets = [0, 88], sizes = [1, 8], strides = [1, 1]} : vector<1x128xf32> to vector<1x8xf32>
      %85 = arith.addf %83, %84 : vector<1x8xf32>
      %86 = vector.extract_strided_slice %62 {offsets = [0, 96], sizes = [1, 8], strides = [1, 1]} : vector<1x128xf32> to vector<1x8xf32>
      %87 = arith.addf %85, %86 : vector<1x8xf32>
      %88 = vector.extract_strided_slice %62 {offsets = [0, 104], sizes = [1, 8], strides = [1, 1]} : vector<1x128xf32> to vector<1x8xf32>
      %89 = arith.addf %87, %88 : vector<1x8xf32>
      %90 = vector.extract_strided_slice %62 {offsets = [0, 112], sizes = [1, 8], strides = [1, 1]} : vector<1x128xf32> to vector<1x8xf32>
      %91 = arith.addf %89, %90 : vector<1x8xf32>
      %92 = vector.extract_strided_slice %62 {offsets = [0, 120], sizes = [1, 8], strides = [1, 1]} : vector<1x128xf32> to vector<1x8xf32>
      %93 = arith.addf %91, %92 : vector<1x8xf32>
      %cst_14 = arith.constant 5.120000e+02 : f32
      %94 = vector.broadcast %cst_14 : f32 to vector<1x8xf32>
      %95 = arith.divf %93, %94 : vector<1x8xf32>
      %c0_15 = arith.constant 0 : index
      %c0_16 = arith.constant 0 : index
      %96 = vector.load %arg5[%c0_15, %c0_16] : memref<1x8xf32, #tpu.memory_space<vmem>>, vector<1x8xf32>
      %cst_17 = arith.constant 9.99999974E-6 : f32
      %97 = vector.broadcast %cst_17 : f32 to vector<1x8xf32>
      %98 = arith.addf %95, %97 : vector<1x8xf32>
      %99 = math.rsqrt %98 : vector<1x8xf32>
      %100 = arith.mulf %96, %99 : vector<1x8xf32>
      %c0_18 = arith.constant 0 : index
      %c0_19 = arith.constant 0 : index
      %101 = vector.load %arg6[%c0_18, %c0_19] : memref<1x8xf32, #tpu.memory_space<vmem>>, vector<1x8xf32>
      %102 = arith.mulf %44, %100 : vector<1x8xf32>
      %103 = arith.subf %101, %102 : vector<1x8xf32>
      %104 = tpu.concatenate %100, %100, %100, %100, %100, %100, %100, %100, %100, %100, %100, %100, %100, %100, %100, %100 in 1 : vector<1x8xf32>, vector<1x8xf32>, vector<1x8xf32>, vector<1x8xf32>, vector<1x8xf32>, vector<1x8xf32>, vector<1x8xf32>, vector<1x8xf32>, vector<1x8xf32>, vector<1x8xf32>, vector<1x8xf32>, vector<1x8xf32>, vector<1x8xf32>, vector<1x8xf32>, vector<1x8xf32>, vector<1x8xf32> -> vector<1x128xf32>
      %c0_20 = arith.constant 0 : index
      %c0_21 = arith.constant 0 : index
      %105 = vector.load %arg10[%c0_20, %c0_21] : memref<1x128xf32, #tpu.memory_space<vmem>>, vector<1x128xf32>
      tpu.vector_store %arg10[%c0_20, %c0_21], %104 {strides = array<i32>} : memref<1x128xf32, #tpu.memory_space<vmem>>, vector<1x128xf32>,
      %106 = tpu.concatenate %103, %103, %103, %103, %103, %103, %103, %103, %103, %103, %103, %103, %103, %103, %103, %103 in 1 : vector<1x8xf32>, vector<1x8xf32>, vector<1x8xf32>, vector<1x8xf32>, vector<1x8xf32>, vector<1x8xf32>, vector<1x8xf32>, vector<1x8xf32>, vector<1x8xf32>, vector<1x8xf32>, vector<1x8xf32>, vector<1x8xf32>, vector<1x8xf32>, vector<1x8xf32>, vector<1x8xf32>, vector<1x8xf32> -> vector<1x128xf32>
      %c0_22 = arith.constant 0 : index
      %c0_23 = arith.constant 0 : index
      %107 = vector.load %arg11[%c0_22, %c0_23] : memref<1x128xf32, #tpu.memory_space<vmem>>, vector<1x128xf32>
      tpu.vector_store %arg11[%c0_22, %c0_23], %106 {strides = array<i32>} : memref<1x128xf32, #tpu.memory_space<vmem>>, vector<1x128xf32>,
    } else {
    }
    %c1_i32_3 = arith.constant 1 : i32
    %8 = arith.cmpi eq, %arg0, %c1_i32_3 : i32
    %9 = arith.extui %8 : i1 to i32
    %c0_i32_4 = arith.constant 0 : i32
    %10 = arith.cmpi ne, %9, %c0_i32_4 : i32
    scf.if %10 {
      %c0 = arith.constant 0 : index
      %c0_5 = arith.constant 0 : index
      %11 = vector.load %arg10[%c0, %c0_5] : memref<1x128xf32, #tpu.memory_space<vmem>>, vector<1x128xf32>
      %12 = vector.shape_cast %11 : vector<1x128xf32> to vector<1x128xf32>
      %13 = vector.broadcast %12 : vector<1x128xf32> to vector<8x128xf32>
      %c0_6 = arith.constant 0 : index
      %c0_7 = arith.constant 0 : index
      %14 = vector.load %arg11[%c0_6, %c0_7] : memref<1x128xf32, #tpu.memory_space<vmem>>, vector<1x128xf32>
      %15 = vector.shape_cast %14 : vector<1x128xf32> to vector<1x128xf32>
      %16 = vector.broadcast %15 : vector<1x128xf32> to vector<8x128xf32>
      %17 = arith.index_cast %arg1 : i32 to index
      %c0_8 = arith.constant 0 : index
      %c0_9 = arith.constant 0 : index
      %18 = tpu.strided_load %arg8[%17, %c0_8, %c0_9] {strides = array<i32: 1, 2, 1>} : memref<2x16x128xf32, #tpu.memory_space<vmem>>, vector<1x8x128xf32>
      %19 = vector.shape_cast %18 : vector<1x8x128xf32> to vector<8x128xf32>
      %20 = arith.mulf %19, %13 : vector<8x128xf32>
      %21 = arith.addf %20, %16 : vector<8x128xf32>
      %22 = arith.index_cast %arg1 : i32 to index
      %c1 = arith.constant 1 : index
      %c0_10 = arith.constant 0 : index
      %23 = tpu.strided_load %arg8[%22, %c1, %c0_10] {strides = array<i32: 1, 2, 1>} : memref<2x16x128xf32, #tpu.memory_space<vmem>>, vector<1x8x128xf32>
      %24 = vector.shape_cast %23 : vector<1x8x128xf32> to vector<8x128xf32>
      %25 = arith.mulf %24, %13 : vector<8x128xf32>
      %26 = arith.addf %25, %16 : vector<8x128xf32>
      %27 = arith.maximumf %21, %26 : vector<8x128xf32>
      %28 = vector.extract_strided_slice %27 {offsets = [0, 0], sizes = [8, 64], strides = [1, 1]} : vector<8x128xf32> to vector<8x64xf32>
      %29 = vector.extract_strided_slice %27 {offsets = [0, 64], sizes = [8, 64], strides = [1, 1]} : vector<8x128xf32> to vector<8x64xf32>
      %30 = arith.maximumf %28, %29 : vector<8x64xf32>
      %cst = arith.constant 0.000000e+00 : f32
      %31 = vector.broadcast %cst : f32 to vector<8x64xf32>
      %32 = arith.maximumf %30, %31 : vector<8x64xf32>
      %c0_11 = arith.constant 0 : index
      %c0_12 = arith.constant 0 : index
      %c0_13 = arith.constant 0 : index
      %33 = vector.load %arg7[%c0_11, %c0_12, %c0_13] : memref<1x8x64xf32, #tpu.memory_space<vmem>>, vector<1x8x64xf32>
      %34 = vector.shape_cast %33 : vector<1x8x64xf32> to vector<8x64xf32>
      %35 = vector.shape_cast %32 : vector<8x64xf32> to vector<1x8x64xf32>
      tpu.vector_store %arg7[%c0_11, %c0_12, %c0_13], %35 {strides = array<i32>} : memref<1x8x64xf32, #tpu.memory_space<vmem>>, vector<1x8x64xf32>,
    } else {
    }
    return
  }
  func.func @transform_0(%arg0: i32, %arg1: i32) -> (i32, i32, i32) {
    %c1_i32 = arith.constant 1 : i32
    %0 = arith.subi %c1_i32, %arg0 : i32
    %1 = arith.muli %arg1, %0 : i32
    %c0_i32 = arith.constant 0 : i32
    %c0_i32_0 = arith.constant 0 : i32
    %c0_i32_1 = arith.constant 0 : i32
    return %1, %c0_i32, %c0_i32_0 : i32, i32, i32
  }
  func.func @transform_1(%arg0: i32, %arg1: i32) -> (i32, i32, i32) {
    %c0_i32 = arith.constant 0 : i32
    %c0_i32_0 = arith.constant 0 : i32
    %c0_i32_1 = arith.constant 0 : i32
    %c0_i32_2 = arith.constant 0 : i32
    return %c0_i32, %c0_i32_0, %c0_i32_1 : i32, i32, i32
  }
  func.func @transform_2(%arg0: i32, %arg1: i32) -> (i32, i32) {
    %c0_i32 = arith.constant 0 : i32
    %c0_i32_0 = arith.constant 0 : i32
    %c0_i32_1 = arith.constant 0 : i32
    return %c0_i32, %c0_i32_0 : i32, i32
  }
  func.func @transform_3(%arg0: i32, %arg1: i32) -> (i32, i32) {
    %c0_i32 = arith.constant 0 : i32
    %c0_i32_0 = arith.constant 0 : i32
    %c0_i32_1 = arith.constant 0 : i32
    return %c0_i32, %c0_i32_0 : i32, i32
  }
  func.func @transform_4(%arg0: i32, %arg1: i32) -> (i32, i32) {
    %c0_i32 = arith.constant 0 : i32
    %c0_i32_0 = arith.constant 0 : i32
    %c0_i32_1 = arith.constant 0 : i32
    return %c0_i32, %c0_i32_0 : i32, i32
  }
  func.func @transform_5(%arg0: i32, %arg1: i32) -> (i32, i32, i32) {
    %0 = arith.muli %arg0, %arg1 : i32
    %c0_i32 = arith.constant 0 : i32
    %c0_i32_0 = arith.constant 0 : i32
    %c0_i32_1 = arith.constant 0 : i32
    return %0, %c0_i32, %c0_i32_0 : i32, i32, i32
  }
}

</mosaic_0001>

<llo_original>
// kernel: tile.8
$region0: #{tile.8}
  #allocation0 [shape = 's32[1]{0}', space=sflag, size = 0x4, scoped, tag = 'scoped memory for tile.8']
  %s0 = inlined_call_operand.vmem [shape: f32[8], index: 0, kind: input, shape index: {}]
  %s1 = inlined_call_operand.vmem [shape: f32[16,8], index: 1, kind: output, shape index: {}]
  // Predicated region
  $region2: #{tile.8} parent=0 // pred_check
    _
  $region3: #{tile.8} parent=0 // pred_check_branch
    %3 = sbr.rel (0) target = $region5
  $region4: #{tile.8} parent=0 // pred_region
    _
  $region5: #{tile.8} parent=0 // pred_fallthru
    _
  %v4 = vld [vmem:[%s0] ss:$0 sm:$0xff]
  %5 = vst [vmem:[%s1] sm:$0xff] %v4
  %s6 = scalar_lea.vmem %s1, 8
  %7 = vst [vmem:[%s6] sm:$0xff] %v4

// kernel: tile.9
$region0: #{tile.9}
  %s0 = inlined_call_operand.vmem [shape: f32[16,8], index: 0, kind: input, shape index: {}]
  %s1 = inlined_call_operand.vmem [shape: f32[1,128], index: 1, kind: output, shape index: {}]
  $region1: #{tile.9} parent=0
    #allocation0 [shape = 'u8[4096]{0}', space=vmem, size = 0x1000, scoped, tag = 'scoped mem for output reshape']
    %v2 = vld [vmem:[%s0] sm:$0x1]
    %vm3 = vcmask 64512
    %4 = vst.msk [vmem:[#allocation0] sm:$0x1] %vm3, %v2
    %s5 = scalar_lea.vmem %s0, 15
    %v6 = vld [vmem:[%s5] sm:$0x1]
    %7 = vrot.lane.b32.xlu0 %v6, 120
    %v8 = vpop.permute.xlu0 %7
    %vm9 = vcmask 1048512
    %10 = vst.msk [vmem:[#allocation0] sm:$0x1] %vm9, %v8
    %s11 = scalar_lea.vmem %s0, 14
    %v12 = vld [vmem:[%s11] sm:$0x1]
    %13 = vrot.lane.b32.xlu0 %v12, 112
    %v14 = vpop.permute.xlu0 %13
    %vm15 = vcmask 982912
    %16 = vst.msk [vmem:[#allocation0] sm:$0x1] %vm15, %v14
    %s17 = scalar_lea.vmem %s0, 13
    %v18 = vld [vmem:[%s17] sm:$0x1]
    %19 = vrot.lane.b32.xlu0 %v18, 104
    %v20 = vpop.permute.xlu0 %19
    %vm21 = vcmask 917312
    %22 = vst.msk [vmem:[#allocation0] sm:$0x1] %vm21, %v20
    %s23 = scalar_lea.vmem %s0, 12
    %v24 = vld [vmem:[%s23] sm:$0x1]
    %25 = vrot.lane.b32.xlu0 %v24, 96
    %v26 = vpop.permute.xlu0 %25
    %vm27 = vcmask 851712
    %28 = vst.msk [vmem:[#allocation0] sm:$0x1] %vm27, %v26
    %s29 = scalar_lea.vmem %s0, 11
    %v30 = vld [vmem:[%s29] sm:$0x1]
    %31 = vrot.lane.b32.xlu0 %v30, 88
    %v32 = vpop.permute.xlu0 %31
    %vm33 = vcmask 786112
    %34 = vst.msk [vmem:[#allocation0] sm:$0x1] %vm33, %v32
    %s35 = scalar_lea.vmem %s0, 10
    %v36 = vld [vmem:[%s35] sm:$0x1]
    %37 = vrot.lane.b32.xlu0 %v36, 80
    %v38 = vpop.permute.xlu0 %37
    %vm39 = vcmask 720512
    %40 = vst.msk [vmem:[#allocation0] sm:$0x1] %vm39, %v38
    %s41 = scalar_lea.vmem %s0, 9
    %v42 = vld [vmem:[%s41] sm:$0x1]
    %43 = vrot.lane.b32.xlu0 %v42, 72
    %v44 = vpop.permute.xlu0 %43
    %vm45 = vcmask 654912
    %46 = vst.msk [vmem:[#allocation0] sm:$0x1] %vm45, %v44
    %s47 = scalar_lea.vmem %s0, 8
    %v48 = vld [vmem:[%s47] sm:$0x1]
    %49 = vrot.lane.b32.xlu0 %v48, 64
    %v50 = vpop.permute.xlu0 %49
    %vm51 = vcmask 589312
    %52 = vst.msk [vmem:[#allocation0] sm:$0x1] %vm51, %v50
    %s53 = scalar_lea.vmem %s0, 7
    %v54 = vld [vmem:[%s53] sm:$0x1]
    %55 = vrot.lane.b32.xlu0 %v54, 56
    %v56 = vpop.permute.xlu0 %55
    %vm57 = vcmask 523712
    %58 = vst.msk [vmem:[#allocation0] sm:$0x1] %vm57, %v56
    %s59 = scalar_lea.vmem %s0, 6
    %v60 = vld [vmem:[%s59] sm:$0x1]
    %61 = vrot.lane.b32.xlu0 %v60, 48
    %v62 = vpop.permute.xlu0 %61
    %vm63 = vcmask 458112
    %64 = vst.msk [vmem:[#allocation0] sm:$0x1] %vm63, %v62
    %s65 = scalar_lea.vmem %s0, 5
    %v66 = vld [vmem:[%s65] sm:$0x1]
    %67 = vrot.lane.b32.xlu0 %v66, 40
    %v68 = vpop.permute.xlu0 %67
    %vm69 = vcmask 392512
    %70 = vst.msk [vmem:[#allocation0] sm:$0x1] %vm69, %v68
    %s71 = scalar_lea.vmem %s0, 4
    %v72 = vld [vmem:[%s71] sm:$0x1]
    %73 = vrot.lane.b32.xlu0 %v72, 32
    %v74 = vpop.permute.xlu0 %73
    %vm75 = vcmask 326912
    %76 = vst.msk [vmem:[#allocation0] sm:$0x1] %vm75, %v74
    %s77 = scalar_lea.vmem %s0, 3
    %v78 = vld [vmem:[%s77] sm:$0x1]
    %79 = vrot.lane.b32.xlu0 %v78, 24
    %v80 = vpop.permute.xlu0 %79
    %vm81 = vcmask 261312
    %82 = vst.msk [vmem:[#allocation0] sm:$0x1] %vm81, %v80
    %s83 = scalar_lea.vmem %s0, 2
    %v84 = vld [vmem:[%s83] sm:$0x1]
    %85 = vrot.lane.b32.xlu0 %v84, 16
    %v86 = vpop.permute.xlu0 %85
    %vm87 = vcmask 195712
    %88 = vst.msk [vmem:[#allocation0] sm:$0x1] %vm87, %v86
    %s89 = scalar_lea.vmem %s0, 1
    %v90 = vld [vmem:[%s89] sm:$0x1]
    %91 = vrot.lane.b32.xlu0 %v90, 8
    %v92 = vpop.permute.xlu0 %91
    %vm93 = vcmask 130112
    %94 = vst.msk [vmem:[#allocation0] sm:$0x1] %vm93, %v92
    %s96 = sshllo.u32 0, 1
    %v98 = vld [vmem:[#allocation0] sm:%s96]
    %s99 = sshllo.u32 0, 1
    %100 = vst [vmem:[%s1] sm:%s99] %v98

// kernel: conv_2d_forward.1
$region0: #{conv_2d_forward.1}
  #allocation0 [shape = 'u32[]', space=smem, size = 0x4, offset = 0x4, fixed_abs, tag = 'smem constant byte address 0x4 - core index']
  #allocation1 [shape = 'u32[144,128]{1,0:T(1,128)}', space=vmem, size = 0x12000, scoped, tag = 'internal scratch']
  #allocation2 [shape = 'f32[2,16,128]{2,1,0:T(8,128)}', space=vmem, size = 0x4000, scoped, tag = 'scratch operand']
  #allocation3 [shape = 'f32[1,128]{1,0:T(1,128)}', space=vmem, size = 0x200, scoped, tag = 'scratch operand']
  #allocation4 [shape = 'f32[1,128]{1,0:T(1,128)}', space=vmem, size = 0x200, scoped, tag = 'scratch operand']
  #allocation5 [shape = 'f32[1,128]{1,0:T(1,128)}', space=vmem, size = 0x200, scoped, tag = 'scratch operand']
  %s0 = inlined_call_operand.vmem [shape: f32[2,18,72], index: 0, kind: input, shape index: {}]
  %s1 = inlined_call_operand.vmem [shape: f32[3,72,128], index: 1, kind: input, shape index: {}]
  %s2 = inlined_call_operand.vmem [shape: f32[1,128], index: 2, kind: input, shape index: {}]
  %s3 = inlined_call_operand.vmem [shape: f32[1,8], index: 3, kind: input, shape index: {}]
  %s4 = inlined_call_operand.vmem [shape: f32[1,8], index: 4, kind: input, shape index: {}]
  %s5 = inlined_call_operand.vmem [shape: f32[2,8,64], index: 5, kind: output, shape index: {}]
  %s6 = sld [smem:[#allocation0]]
  $region69: #{conv_2d_forward.1} parent=0
    _
  %s8 = ssub.s32 1, %s6
  %s9 = scalar_select 0, %s8, %s6
  loop: start=0, step=1, limit=6
  $region2: #{conv_2d_forward.1} parent=0 // loop_pre_header
    _
  $region3: #{conv_2d_forward.1} parent=0 // loop_header
    %s11 = sphi 0, %s15
    %p12 = scmp.ge.s32.totalorder %s11, 6
    %s18 = sphi 0, %s30
    %s19 = sphi 0, %s26
    %s20 = sphi 0, %s18
    %s21 = sphi 0, %s19
    %s22 = sphi 0, %s20
    %s23 = sphi 0, %s21
    %s37 = sphi 0, %s39
    %s40 = sphi 0, %s37
    %s41 = sphi 0, %s40
    %s57 = sphi 0, %s41
    %s61 = sphi 0, %s61
    %s63 = sphi 0, %s61
    %s64 = sphi 0, %s63
    %s78 = sphi 0, %s64
    %s82 = sphi 0, %s82
    %s84 = sphi 0, %s82
    %s85 = sphi 0, %s84
    %s99 = sphi 0, %s85
    %s103 = sphi 0, %s103
    %s105 = sphi 0, %s103
    %s106 = sphi 0, %s105
    %s120 = sphi 0, %s106
    %s124 = sphi 0, %s124
    %s126 = sphi 0, %s124
    %s127 = sphi 0, %s126
    %s141 = sphi 0, %s127
    %s149 = sphi 0, %s151
    %s152 = sphi 0, %s149
    %s153 = sphi 0, %s152
    %s169 = sphi 0, %s153
  $region4: #{conv_2d_forward.1} parent=0 // loop_header_branch
    %14 = sbr.rel (%p12) target = $region8
  $region5: #{conv_2d_forward.1} parent=0 // loop_body
    %s16 = ssub.s32 %s11, 1
    %s17 = ssub.s32 %s11, 2
    %s24 = sadd.s32 1, %s19
    %p25 = scmp.ge.s32.totalorder %s24, 2
    %s26 = scalar_select %p25, 0, %s24
    %s27 = sadd.s32 1, %s18
    %s28 = scalar_select %p25, %s27, %s18
    %p29 = scmp.ge.s32.totalorder %s28, 2
    %s30 = scalar_select %p29, 0, %s28
    %s31 = ssub.s32 1, %s18
    %s32 = smul.u32 %s19, %s31
    %s33 = ssub.s32 1, %s30
    %s34 = smul.u32 %s26, %s33
    %s35 = ssub.s32 %s32, %s34
    %p36 = scmp.eq.s32.totalorder %s35, 0
    %s38 = sadd.s32 %s37, 1
    %s39 = scalar_select %p36, %s37, %s38
    %p42 = pneg %p36
    %p43 = scmp.eq.s32.totalorder %s11, 3
    %p44 = por %p42, %p43
    %p45 = scmp.ne.s32.totalorder %s37, %s40
    %p46 = scmp.eq.s32.totalorder %s11, 0
    %p47 = por %p45, %p46
    %p48 = scmp.ne.s32.totalorder %s37, %s40
    %p49 = scmp.eq.s32.totalorder %s16, 3
    %p50 = por %p48, %p49
    %p51 = scmp.ne.s32.totalorder %s40, %s41
    %p52 = scmp.eq.s32.totalorder %s16, 0
    %p53 = por %p51, %p52
    %p54 = scmp.ne.s32.totalorder %s40, %s41
    %p55 = scmp.eq.s32.totalorder %s17, 3
    %p56 = por %p54, %p55
    %p58 = scmp.ne.s32.totalorder %s41, %s57
    %p59 = scmp.eq.s32.totalorder %s17, 0
    %p60 = por %p58, %p59
    %s62 = sadd.s32 %s61, 1
    %p65 = scmp.eq.s32.totalorder %s11, 3
    %p66 = scmp.ne.s32.totalorder %s61, %s63
    %p67 = scmp.eq.s32.totalorder %s11, 0
    %p68 = por %p66, %p67
    %p69 = scmp.ne.s32.totalorder %s61, %s63
    %p70 = scmp.eq.s32.totalorder %s16, 3
    %p71 = por %p69, %p70
    %p72 = scmp.ne.s32.totalorder %s63, %s64
    %p73 = scmp.eq.s32.totalorder %s16, 0
    %p74 = por %p72, %p73
    %p75 = scmp.ne.s32.totalorder %s63, %s64
    %p76 = scmp.eq.s32.totalorder %s17, 3
    %p77 = por %p75, %p76
    %p79 = scmp.ne.s32.totalorder %s64, %s78
    %p80 = scmp.eq.s32.totalorder %s17, 0
    %p81 = por %p79, %p80
    %s83 = sadd.s32 %s82, 1
    %p86 = scmp.eq.s32.totalorder %s11, 3
    %p87 = scmp.ne.s32.totalorder %s82, %s84
    %p88 = scmp.eq.s32.totalorder %s11, 0
    %p89 = por %p87, %p88
    %p90 = scmp.ne.s32.totalorder %s82, %s84
    %p91 = scmp.eq.s32.totalorder %s16, 3
    %p92 = por %p90, %p91
    %p93 = scmp.ne.s32.totalorder %s84, %s85
    %p94 = scmp.eq.s32.totalorder %s16, 0
    %p95 = por %p93, %p94
    %p96 = scmp.ne.s32.totalorder %s84, %s85
    %p97 = scmp.eq.s32.totalorder %s17, 3
    %p98 = por %p96, %p97
    %p100 = scmp.ne.s32.totalorder %s85, %s99
    %p101 = scmp.eq.s32.totalorder %s17, 0
    %p102 = por %p100, %p101
    %s104 = sadd.s32 %s103, 1
    %p107 = scmp.eq.s32.totalorder %s11, 3
    %p108 = scmp.ne.s32.totalorder %s103, %s105
    %p109 = scmp.eq.s32.totalorder %s11, 0
    %p110 = por %p108, %p109
    %p111 = scmp.ne.s32.totalorder %s103, %s105
    %p112 = scmp.eq.s32.totalorder %s16, 3
    %p113 = por %p111, %p112
    %p114 = scmp.ne.s32.totalorder %s105, %s106
    %p115 = scmp.eq.s32.totalorder %s16, 0
    %p116 = por %p114, %p115
    %p117 = scmp.ne.s32.totalorder %s105, %s106
    %p118 = scmp.eq.s32.totalorder %s17, 3
    %p119 = por %p117, %p118
    %p121 = scmp.ne.s32.totalorder %s106, %s120
    %p122 = scmp.eq.s32.totalorder %s17, 0
    %p123 = por %p121, %p122
    %s125 = sadd.s32 %s124, 1
    %p128 = scmp.eq.s32.totalorder %s11, 3
    %p129 = scmp.ne.s32.totalorder %s124, %s126
    %p130 = scmp.eq.s32.totalorder %s11, 0
    %p131 = por %p129, %p130
    %p132 = scmp.ne.s32.totalorder %s124, %s126
    %p133 = scmp.eq.s32.totalorder %s16, 3
    %p134 = por %p132, %p133
    %p135 = scmp.ne.s32.totalorder %s126, %s127
    %p136 = scmp.eq.s32.totalorder %s16, 0
    %p137 = por %p135, %p136
    %p138 = scmp.ne.s32.totalorder %s126, %s127
    %p139 = scmp.eq.s32.totalorder %s17, 3
    %p140 = por %p138, %p139
    %p142 = scmp.ne.s32.totalorder %s127, %s141
    %p143 = scmp.eq.s32.totalorder %s17, 0
    %p144 = por %p142, %p143
    %s145 = smul.u32 %s18, %s19
    %s146 = smul.u32 %s30, %s26
    %s147 = ssub.s32 %s145, %s146
    %p148 = scmp.eq.s32.totalorder %s147, 0
    %s150 = sadd.s32 %s149, 1
    %s151 = scalar_select %p148, %s149, %s150
    %p154 = pneg %p148
    %p155 = scmp.eq.s32.totalorder %s11, 3
    %p156 = por %p154, %p155
    %p157 = scmp.ne.s32.totalorder %s149, %s152
    %p158 = scmp.eq.s32.totalorder %s11, 0
    %p159 = por %p157, %p158
    %p160 = scmp.ne.s32.totalorder %s149, %s152
    %p161 = scmp.eq.s32.totalorder %s16, 3
    %p162 = por %p160, %p161
    %p163 = scmp.ne.s32.totalorder %s152, %s153
    %p164 = scmp.eq.s32.totalorder %s16, 0
    %p165 = por %p163, %p164
    %p166 = scmp.ne.s32.totalorder %s152, %s153
    %p167 = scmp.eq.s32.totalorder %s17, 3
    %p168 = por %p166, %p167
    %p170 = scmp.ne.s32.totalorder %s153, %s169
    %p171 = scmp.eq.s32.totalorder %s17, 0
    %p172 = por %p170, %p171
    %p173 = scmp.le.s32.totalorder 1, %s11
    %p174 = scmp.lt.s32.totalorder %s11, 5
    %p175 = pnand %p173, %p174
    %p176 = pneg %p175
    // Predicated region
    $region9: #{conv_2d_forward.1} parent=5 // pred_check
      _
    $region10: #{conv_2d_forward.1} parent=5 // pred_check_branch
      %178 = sbr.rel (%p175) target = $region12
    $region11: #{conv_2d_forward.1} parent=5 // pred_region
      %s179 = ssub.s32 %s11, 1
      // Predicated region
      $region13: #{conv_2d_forward.1} parent=11 // pred_check
        %p180 = pneg %p74
      $region14: #{conv_2d_forward.1} parent=11 // pred_check_branch
        %182 = sbr.rel (%p180) target = $region16
      $region15: #{conv_2d_forward.1} parent=11 // pred_region
        _
      $region16: #{conv_2d_forward.1} parent=11 // pred_fallthru
        _
      // Predicated region
      $region17: #{conv_2d_forward.1} parent=11 // pred_check
        %p183 = pneg %p95
      $region18: #{conv_2d_forward.1} parent=11 // pred_check_branch
        %185 = sbr.rel (%p183) target = $region20
      $region19: #{conv_2d_forward.1} parent=11 // pred_region
        _
      $region20: #{conv_2d_forward.1} parent=11 // pred_fallthru
        _
      // Predicated region
      $region21: #{conv_2d_forward.1} parent=11 // pred_check
        %p186 = pneg %p116
      $region22: #{conv_2d_forward.1} parent=11 // pred_check_branch
        %188 = sbr.rel (%p186) target = $region24
      $region23: #{conv_2d_forward.1} parent=11 // pred_region
        _
      $region24: #{conv_2d_forward.1} parent=11 // pred_fallthru
        _
      // Predicated region
      $region25: #{conv_2d_forward.1} parent=11 // pred_check
        %p189 = pneg %p137
      $region26: #{conv_2d_forward.1} parent=11 // pred_check_branch
        %191 = sbr.rel (%p189) target = $region28
      $region27: #{conv_2d_forward.1} parent=11 // pred_region
        _
      $region28: #{conv_2d_forward.1} parent=11 // pred_fallthru
        _
    $region12: #{conv_2d_forward.1} parent=5 // pred_fallthru
      _
    %p192 = scmp.lt.s32.totalorder %s11, 4
    // Predicated region
    $region29: #{conv_2d_forward.1} parent=5 // pred_check
      %p193 = pneg %p192
    $region30: #{conv_2d_forward.1} parent=5 // pred_check_branch
      %195 = sbr.rel (%p193) target = $region32
    $region31: #{conv_2d_forward.1} parent=5 // pred_region
      // Predicated region
      $region33: #{conv_2d_forward.1} parent=31 // pred_check
        %p196 = pneg %p47
      $region34: #{conv_2d_forward.1} parent=31 // pred_check_branch
        %198 = sbr.rel (%p196) target = $region36
      $region35: #{conv_2d_forward.1} parent=31 // pred_region
        %s199 = ssub.s32 1, %s18
        %s200 = smul.u32 %s19, %s199
        %p201 = scmp.lt.s32.totalorder %s200, 1
        %s202 = scalar_select %p201, %s200, 1
        %s203 = smul.addr %s202, 3
        %s204 = smul.addr %s203, 8
        %s205 = scalar_lea.vmem %s0, %s204
        %s206 = ssub.s32 1, %s18
        %s207 = smul.u32 %s19, %s206
      $region36: #{conv_2d_forward.1} parent=31 // pred_fallthru
        _
    $region32: #{conv_2d_forward.1} parent=5 // pred_fallthru
      _
    %p208 = scmp.le.s32.totalorder 1, %s11
    %p209 = scmp.lt.s32.totalorder %s11, 5
    %p210 = pnand %p208, %p209
    %p211 = pneg %p210
    // Predicated region
    $region37: #{conv_2d_forward.1} parent=5 // pred_check
      _
    $region38: #{conv_2d_forward.1} parent=5 // pred_check_branch
      %213 = sbr.rel (%p210) target = $region40
    $region39: #{conv_2d_forward.1} parent=5 // pred_region
      %s214 = ssub.s32 %s11, 1
      %s215 = ssub.s32 1, %s20
      %s216 = smul.u32 %s21, %s215
      %p217 = scmp.lt.s32.totalorder %s216, 1
      %s218 = scalar_select %p217, %s216, 1
      %s219 = smul.addr %s218, 3
      %s220 = smul.addr %s219, 8
      %s221 = scalar_lea.vmem %s0, %s220
      %p222 = pneg %p53
      %p223 = pneg %p50
      %p224 = pneg %p74
      %p225 = pneg %p71
      %p226 = pneg %p95
      %p227 = pneg %p92
      %p228 = pneg %p116
      %p229 = pneg %p113
      %p230 = pneg %p137
      %p231 = pneg %p134
      %p232 = pneg %p165
      %p233 = pneg %p162
      %s234 = smul.u32 %s20, %s21
      %p235 = scmp.lt.s32.totalorder %s234, 1
      %s236 = scalar_select %p235, %s234, 1
      %s237 = smul.addr %s236, 8
      %s238 = scalar_lea.vmem %s5, %s237
      %s239 = ssub.s32 1, %s20
      %s240 = smul.u32 %s21, %s239
      %p241 = scmp.lt.s32.totalorder %s240, 1
      %s242 = scalar_select %p241, %s240, 1
      %s243 = smul.addr %s242, 3
      %s244 = smul.addr %s243, 8
      %s245 = scalar_lea.vmem %s0, %s244
      %s246 = ssub.s32 1, %s20
      %s247 = smul.u32 %s21, %s246
      %s248 = smul.u32 %s20, %s21
      %p249 = scmp.lt.s32.totalorder %s248, 1
      %s250 = scalar_select %p249, %s248, 1
      %s251 = smul.addr %s250, 8
      %s252 = scalar_lea.vmem %s5, %s251
      %s253 = smul.u32 %s20, %s21
      %p254 = scmp.eq.s32.totalorder %s20, 0
      // Predicated region
      $region41: #{conv_2d_forward.1} parent=39 // pred_check
        %p255 = pneg %p254
      $region42: #{conv_2d_forward.1} parent=39 // pred_check_branch
        %257 = sbr.rel (%p255) target = $region44
      $region43: #{conv_2d_forward.1} parent=39 // pred_region
        %v258 = vld [vmem:[%s245] sm:$0xff]
        %v259 = vld [vmem:[%s245 + $0x8] sm:$0xff]
        %v260 = vld [vmem:[%s1] sm:$0xff]
        %v261 = vld [vmem:[%s1 + $0x8] sm:$0xff]
        %v262 = vld [vmem:[%s1 + $0x10] sm:$0xff]
        %v263 = vld [vmem:[%s1 + $0x18] sm:$0xff]
        %v264 = vld [vmem:[%s1 + $0x20] sm:$0xff]
        %v265 = vld [vmem:[%s1 + $0x28] sm:$0xff]
        %v266 = vld [vmem:[%s1 + $0x30] sm:$0xff]
        %v267 = vld [vmem:[%s1 + $0x38] sm:$0xff]
        %v268 = vld [vmem:[%s1 + $0x40] sm:$0xff]
        %v269 = vld [vmem:[%s245 + $0x1] sm:$0xff]
        %v270 = vld [vmem:[%s245 + $0x9] sm:$0xff]
        %s271 = scalar_lea.vmem %s1, 72
        %v272 = vld [vmem:[%s271] sm:$0xff]
        %v273 = vld [vmem:[%s271 + $0x8] sm:$0xff]
        %v274 = vld [vmem:[%s271 + $0x10] sm:$0xff]
        %v275 = vld [vmem:[%s271 + $0x18] sm:$0xff]
        %v276 = vld [vmem:[%s271 + $0x20] sm:$0xff]
        %v277 = vld [vmem:[%s271 + $0x28] sm:$0xff]
        %v278 = vld [vmem:[%s271 + $0x30] sm:$0xff]
        %v279 = vld [vmem:[%s271 + $0x38] sm:$0xff]
        %v280 = vld [vmem:[%s271 + $0x40] sm:$0xff]
        %vm281 = vcmask 588800
        %v283 = vsel %vm281, %v269, 0
        %v286 = vsel %vm281, %v270, 0
        %288 = vmatprep.subr.mxu0 0.0
        %289 = vmatpush1.msra.mxu0 %v272
        %290 = vmatprep.subr.mxu0 0.0
        %291 = vmatpush1.msra.mxu0 %v273
        %292 = vmatprep.subr.mxu0 0.0
        %293 = vmatpush1.msra.mxu0 %v274
        %294 = vmatprep.subr.mxu0 0.0
        %295 = vmatpush1.msra.mxu0 %v275
        %296 = vmatprep.subr.mxu0 0.0
        %297 = vmatpush1.msra.mxu0 %v276
        %298 = vmatprep.subr.mxu0 0.0
        %299 = vmatpush1.msra.mxu0 %v277
        %300 = vmatprep.subr.mxu0 0.0
        %301 = vmatpush1.msra.mxu0 %v278
        %302 = vmatprep.subr.mxu0 0.0
        %303 = vmatpush1.msra.mxu0 %v279
        %304 = vmatprep.subr.mxu0 0.0
        %305 = vmatpush1.msra.mxu0 %v280
        %306 = vmatprep.subr.mxu0 0.0
        %307 = vmatpush1.msra.mxu0 0.0
        %308 = vmatprep.subr.mxu0 0.0
        %309 = vmatpush1.msra.mxu0 0.0
        %310 = vmatprep.subr.mxu0 0.0
        %311 = vmatpush1.msra.mxu0 0.0
        %312 = vmatprep.subr.mxu0 0.0
        %313 = vmatpush1.msra.mxu0 0.0
        %314 = vmatprep.subr.mxu0 0.0
        %315 = vmatpush1.msra.mxu0 0.0
        %316 = vmatprep.subr.mxu0 0.0
        %317 = vmatpush1.msra.mxu0 0.0
        %318 = vmatprep.subr.mxu0 0.0
        %319 = vmatpush1.msra.mxu0 0.0
        %320 = vmatprep.subr.mxu0 0.0
        %321 = vmatpush1.msra.mxu0 0.0
        %322 = vmatprep.subr.mxu0 0.0
        %323 = vmatpush1.msra.mxu0 0.0
        %324 = vmatprep.subr.mxu0 0.0
        %325 = vmatpush1.msra.mxu0 0.0
        %326 = vmatprep.subr.mxu0 0.0
        %327 = vmatpush1.msra.mxu0 0.0
        %328 = vmatprep.subr.mxu0 0.0
        %329 = vmatpush1.msra.mxu0 0.0
        %330 = vmatprep.subr.mxu0 0.0
        %331 = vmatpush1.msra.mxu0 0.0
        %332 = vmatprep.subr.mxu0 0.0
        %333 = vmatpush1.msra.mxu0 0.0
        %334 = vmatprep.subr.mxu0 0.0
        %335 = vmatpush1.msra.mxu0 0.0
        %336 = vmatprep.subr.mxu0 0.0
        %337 = vmatpush1.msra.mxu0 0.0
        %338 = vmatprep.subr.mxu0 0.0
        %339 = vmatpush1.msra.mxu0 0.0
        %340 = vmatprep.subr.mxu0 0.0
        %341 = vmatpush1.msra.mxu0 0.0
        %342 = vmatprep.subr.mxu0 0.0
        %343 = vmatpush1.msra.mxu0 0.0
        %344 = vmatprep.subr.mxu0 0.0
        %345 = vmatpush1.msra.mxu0 0.0
        %346 = vmatprep.subr.mxu0 0.0
        %347 = vmatpush1.msra.mxu0 0.0
        %348 = vmatprep.subr.mxu0 0.0
        %349 = vmatpush1.msra.mxu0 0.0
        %350 = vmatprep.subr.mxu0 0.0
        %351 = vmatpush1.msra.mxu0 0.0
        %352 = vmatprep.mubr.f32.mxu0 0.0
        %353 = vmatmul.mubr.f32.gmra.mrb[0].mxu0 %v283
        %v354 = vpop.f32.mrb[0].mxu0
        %v355 = vadd.f32 0.0, %v354
        %v356 = vpop.f32.mrb[0].mxu0
        %357 = vmatprep.mubr.f32.mxu0 0.0
        %358 = vmatmul.mubr.f32.gmra.mrb[0].mxu0 %v286
        %v359 = vpop.f32.mrb[0].mxu0
        %v360 = vadd.f32 0.0, %v359
        %v361 = vpop.f32.mrb[0].mxu0
        %362 = vdwg.mxu0
        %v364 = vsel %vm281, %v258, 0
        %v367 = vsel %vm281, %v259, 0
        %369 = vmatprep.subr.mxu0 0.0
        %370 = vmatpush1.msra.mxu0 %v260
        %371 = vmatprep.subr.mxu0 0.0
        %372 = vmatpush1.msra.mxu0 %v261
        %373 = vmatprep.subr.mxu0 0.0
        %374 = vmatpush1.msra.mxu0 %v262
        %375 = vmatprep.subr.mxu0 0.0
        %376 = vmatpush1.msra.mxu0 %v263
        %377 = vmatprep.subr.mxu0 0.0
        %378 = vmatpush1.msra.mxu0 %v264
        %379 = vmatprep.subr.mxu0 0.0
        %380 = vmatpush1.msra.mxu0 %v265
        %381 = vmatprep.subr.mxu0 0.0
        %382 = vmatpush1.msra.mxu0 %v266
        %383 = vmatprep.subr.mxu0 0.0
        %384 = vmatpush1.msra.mxu0 %v267
        %385 = vmatprep.subr.mxu0 0.0
        %386 = vmatpush1.msra.mxu0 %v268
        %387 = vmatprep.subr.mxu0 0.0
        %388 = vmatpush1.msra.mxu0 0.0
        %389 = vmatprep.subr.mxu0 0.0
        %390 = vmatpush1.msra.mxu0 0.0
        %391 = vmatprep.subr.mxu0 0.0
        %392 = vmatpush1.msra.mxu0 0.0
        %393 = vmatprep.subr.mxu0 0.0
        %394 = vmatpush1.msra.mxu0 0.0
        %395 = vmatprep.subr.mxu0 0.0
        %396 = vmatpush1.msra.mxu0 0.0
        %397 = vmatprep.subr.mxu0 0.0
        %398 = vmatpush1.msra.mxu0 0.0
        %399 = vmatprep.subr.mxu0 0.0
        %400 = vmatpush1.msra.mxu0 0.0
        %401 = vmatprep.subr.mxu0 0.0
        %402 = vmatpush1.msra.mxu0 0.0
        %403 = vmatprep.subr.mxu0 0.0
        %404 = vmatpush1.msra.mxu0 0.0
        %405 = vmatprep.subr.mxu0 0.0
        %406 = vmatpush1.msra.mxu0 0.0
        %407 = vmatprep.subr.mxu0 0.0
        %408 = vmatpush1.msra.mxu0 0.0
        %409 = vmatprep.subr.mxu0 0.0
        %410 = vmatpush1.msra.mxu0 0.0
        %411 = vmatprep.subr.mxu0 0.0
        %412 = vmatpush1.msra.mxu0 0.0
        %413 = vmatprep.subr.mxu0 0.0
        %414 = vmatpush1.msra.mxu0 0.0
        %415 = vmatprep.subr.mxu0 0.0
        %416 = vmatpush1.msra.mxu0 0.0
        %417 = vmatprep.subr.mxu0 0.0
        %418 = vmatpush1.msra.mxu0 0.0
        %419 = vmatprep.subr.mxu0 0.0
        %420 = vmatpush1.msra.mxu0 0.0
        %421 = vmatprep.subr.mxu0 0.0
        %422 = vmatpush1.msra.mxu0 0.0
        %423 = vmatprep.subr.mxu0 0.0
        %424 = vmatpush1.msra.mxu0 0.0
        %425 = vmatprep.subr.mxu0 0.0
        %426 = vmatpush1.msra.mxu0 0.0
        %427 = vmatprep.subr.mxu0 0.0
        %428 = vmatpush1.msra.mxu0 0.0
        %429 = vmatprep.subr.mxu0 0.0
        %430 = vmatpush1.msra.mxu0 0.0
        %431 = vmatprep.subr.mxu0 0.0
        %432 = vmatpush1.msra.mxu0 0.0
        %433 = vmatprep.mubr.f32.mxu0 0.0
        %434 = vmatmul.mubr.f32.gmra.mrb[0].mxu0 %v364
        %v435 = vpop.f32.mrb[0].mxu0
        %v436 = vadd.f32 %v355, %v435
        %v437 = vpop.f32.mrb[0].mxu0
        %438 = vmatprep.mubr.f32.mxu0 0.0
        %439 = vmatmul.mubr.f32.gmra.mrb[0].mxu0 %v367
        %v440 = vpop.f32.mrb[0].mxu0
        %v441 = vadd.f32 %v360, %v440
        %v442 = vpop.f32.mrb[0].mxu0
        %443 = vdwg.mxu0
        %v444 = vld [vmem:[%s245 + $0x2] sm:$0xff]
        %v445 = vld [vmem:[%s245 + $0xa] sm:$0xff]
        %s446 = scalar_lea.vmem %s1, 144
        %v447 = vld [vmem:[%s446] sm:$0xff]
        %v448 = vld [vmem:[%s446 + $0x8] sm:$0xff]
        %v449 = vld [vmem:[%s446 + $0x10] sm:$0xff]
        %v450 = vld [vmem:[%s446 + $0x18] sm:$0xff]
        %v451 = vld [vmem:[%s446 + $0x20] sm:$0xff]
        %v452 = vld [vmem:[%s446 + $0x28] sm:$0xff]
        %v453 = vld [vmem:[%s446 + $0x30] sm:$0xff]
        %v454 = vld [vmem:[%s446 + $0x38] sm:$0xff]
        %v455 = vld [vmem:[%s446 + $0x40] sm:$0xff]
        %v457 = vsel %vm281, %v444, 0
        %v460 = vsel %vm281, %v445, 0
        %462 = vmatprep.subr.mxu0 0.0
        %463 = vmatpush1.msra.mxu0 %v447
        %464 = vmatprep.subr.mxu0 0.0
        %465 = vmatpush1.msra.mxu0 %v448
        %466 = vmatprep.subr.mxu0 0.0
        %467 = vmatpush1.msra.mxu0 %v449
        %468 = vmatprep.subr.mxu0 0.0
        %469 = vmatpush1.msra.mxu0 %v450
        %470 = vmatprep.subr.mxu0 0.0
        %471 = vmatpush1.msra.mxu0 %v451
        %472 = vmatprep.subr.mxu0 0.0
        %473 = vmatpush1.msra.mxu0 %v452
        %474 = vmatprep.subr.mxu0 0.0
        %475 = vmatpush1.msra.mxu0 %v453
        %476 = vmatprep.subr.mxu0 0.0
        %477 = vmatpush1.msra.mxu0 %v454
        %478 = vmatprep.subr.mxu0 0.0
        %479 = vmatpush1.msra.mxu0 %v455
        %480 = vmatprep.subr.mxu0 0.0
        %481 = vmatpush1.msra.mxu0 0.0
        %482 = vmatprep.subr.mxu0 0.0
        %483 = vmatpush1.msra.mxu0 0.0
        %484 = vmatprep.subr.mxu0 0.0
        %485 = vmatpush1.msra.mxu0 0.0
        %486 = vmatprep.subr.mxu0 0.0
        %487 = vmatpush1.msra.mxu0 0.0
        %488 = vmatprep.subr.mxu0 0.0
        %489 = vmatpush1.msra.mxu0 0.0
        %490 = vmatprep.subr.mxu0 0.0
        %491 = vmatpush1.msra.mxu0 0.0
        %492 = vmatprep.subr.mxu0 0.0
        %493 = vmatpush1.msra.mxu0 0.0
        %494 = vmatprep.subr.mxu0 0.0
        %495 = vmatpush1.msra.mxu0 0.0
        %496 = vmatprep.subr.mxu0 0.0
        %497 = vmatpush1.msra.mxu0 0.0
        %498 = vmatprep.subr.mxu0 0.0
        %499 = vmatpush1.msra.mxu0 0.0
        %500 = vmatprep.subr.mxu0 0.0
        %501 = vmatpush1.msra.mxu0 0.0
        %502 = vmatprep.subr.mxu0 0.0
        %503 = vmatpush1.msra.mxu0 0.0
        %504 = vmatprep.subr.mxu0 0.0
        %505 = vmatpush1.msra.mxu0 0.0
        %506 = vmatprep.subr.mxu0 0.0
        %507 = vmatpush1.msra.mxu0 0.0
        %508 = vmatprep.subr.mxu0 0.0
        %509 = vmatpush1.msra.mxu0 0.0
        %510 = vmatprep.subr.mxu0 0.0
        %511 = vmatpush1.msra.mxu0 0.0
        %512 = vmatprep.subr.mxu0 0.0
        %513 = vmatpush1.msra.mxu0 0.0
        %514 = vmatprep.subr.mxu0 0.0
        %515 = vmatpush1.msra.mxu0 0.0
        %516 = vmatprep.subr.mxu0 0.0
        %517 = vmatpush1.msra.mxu0 0.0
        %518 = vmatprep.subr.mxu0 0.0
        %519 = vmatpush1.msra.mxu0 0.0
        %520 = vmatprep.subr.mxu0 0.0
        %521 = vmatpush1.msra.mxu0 0.0
        %522 = vmatprep.subr.mxu0 0.0
        %523 = vmatpush1.msra.mxu0 0.0
        %524 = vmatprep.subr.mxu0 0.0
        %525 = vmatpush1.msra.mxu0 0.0
        %526 = vmatprep.mubr.f32.mxu0 0.0
        %527 = vmatmul.mubr.f32.gmra.mrb[0].mxu0 %v457
        %v528 = vpop.f32.mrb[0].mxu0
        %v529 = vadd.f32 0.0, %v528
        %v530 = vpop.f32.mrb[0].mxu0
        %531 = vmatprep.mubr.f32.mxu0 0.0
        %532 = vmatmul.mubr.f32.gmra.mrb[0].mxu0 %v460
        %v533 = vpop.f32.mrb[0].mxu0
        %v534 = vadd.f32 0.0, %v533
        %v535 = vpop.f32.mrb[0].mxu0
        %536 = vdwg.mxu0
        %v537 = vadd.f32 %v436, %v529
        %v538 = vadd.f32 %v441, %v534
        %v539 = vld [vmem:[%s2] sm:$0x1]
        %v541 = vlaneseq
        %v542 = vshrl.u32 %v541, 7
        %v543 = vsub.s32 0, %v542
        %v544 = vrot.slane %v539, %v543
        %v546 = vadd.f32 %v537, %v544
        %v547 = vadd.f32 %v538, %v544
        %s548 = smul.u32 %s21, 16
        %s549 = scalar_lea.vmem [#allocation2], %s548
        %550 = vst [vmem:[%s549] sm:$0xff] %v546
        %551 = vst [vmem:[%s549 + $0x8] sm:$0xff] %v547
        %p552 = scmp.eq.s32.totalorder %s21, 0
        // Predicated region
        $region45: #{conv_2d_forward.1} parent=43 // pred_check
          %p553 = pneg %p552
        $region46: #{conv_2d_forward.1} parent=43 // pred_check_branch
          %555 = sbr.rel (%p553) target = $region48
        $region47: #{conv_2d_forward.1} parent=43 // pred_region
          %556 = vst [vmem:[#allocation3] sm:$0x1] 0.0
        $region48: #{conv_2d_forward.1} parent=43 // pred_fallthru
          _
        %v557 = vld [vmem:[#allocation3] sm:$0x1]
        %v558 = vadd.f32 %v546, %v547
        %v559 = vrot.slane %v558, 4
        %v560 = vadd.f32 %v558, %v559
        %v561 = vrot.slane %v560, 2
        %v562 = vadd.f32 %v560, %v561
        %v563 = vrot.slane %v562, 1
        %v564 = vadd.f32 %v562, %v563
        %v565 = vadd.f32 %v557, %v564
        %566 = vst [vmem:[#allocation3] sm:$0x1] %v565
      $region44: #{conv_2d_forward.1} parent=39 // pred_fallthru
        _
      %p567 = scmp.eq.s32.totalorder %s20, 1
      %p568 = scmp.eq.s32.totalorder %s21, 0
      %p569 = pnand %p567, %p568
      %p570 = pneg %p569
      // Predicated region
      $region49: #{conv_2d_forward.1} parent=39 // pred_check
        _
      $region50: #{conv_2d_forward.1} parent=39 // pred_check_branch
        %572 = sbr.rel (%p569) target = $region52
      $region51: #{conv_2d_forward.1} parent=39 // pred_region
        %v573 = vld [vmem:[#allocation3] sm:$0x1]
        %575 = vrot.lane.b32.xlu0 %v573, 120
        %v576 = vpop.permute.xlu0 %575
        %v578 = vadd.f32 %v573, %v576
        %579 = vrot.lane.b32.xlu0 %v573, 112
        %v580 = vpop.permute.xlu0 %579
        %v582 = vadd.f32 %v578, %v580
        %583 = vrot.lane.b32.xlu0 %v573, 104
        %v584 = vpop.permute.xlu0 %583
        %v586 = vadd.f32 %v582, %v584
        %587 = vrot.lane.b32.xlu0 %v573, 96
        %v588 = vpop.permute.xlu0 %587
        %v590 = vadd.f32 %v586, %v588
        %591 = vrot.lane.b32.xlu0 %v573, 88
        %v592 = vpop.permute.xlu0 %591
        %v594 = vadd.f32 %v590, %v592
        %595 = vrot.lane.b32.xlu0 %v573, 80
        %v596 = vpop.permute.xlu0 %595
        %v598 = vadd.f32 %v594, %v596
        %599 = vrot.lane.b32.xlu0 %v573, 72
        %v600 = vpop.permute.xlu0 %599
        %v602 = vadd.f32 %v598, %v600
        %603 = vrot.lane.b32.xlu0 %v573, 64
        %v604 = vpop.permute.xlu0 %603
        %v606 = vadd.f32 %v602, %v604
        %607 = vrot.lane.b32.xlu0 %v573, 56
        %v608 = vpop.permute.xlu0 %607
        %v610 = vadd.f32 %v606, %v608
        %611 = vrot.lane.b32.xlu0 %v573, 48
        %v612 = vpop.permute.xlu0 %611
        %v614 = vadd.f32 %v610, %v612
        %615 = vrot.lane.b32.xlu0 %v573, 40
        %v616 = vpop.permute.xlu0 %615
        %v618 = vadd.f32 %v614, %v616
        %619 = vrot.lane.b32.xlu0 %v573, 32
        %v620 = vpop.permute.xlu0 %619
        %v622 = vadd.f32 %v618, %v620
        %623 = vrot.lane.b32.xlu0 %v573, 24
        %v624 = vpop.permute.xlu0 %623
        %v626 = vadd.f32 %v622, %v624
        %627 = vrot.lane.b32.xlu0 %v573, 16
        %v628 = vpop.permute.xlu0 %627
        %v630 = vadd.f32 %v626, %v628
        %631 = vrot.lane.b32.xlu0 %v573, 8
        %v632 = vpop.permute.xlu0 %631
        %v634 = vadd.f32 %v630, %v632
        %v635 = vrcp.pop 512.0
        %v636 = vmul.f32 %v634, %v635
        %v638 = vlaneseq
        %v639 = vshrl.u32 %v638, 7
        %v640 = vsub.s32 0, %v639
        %v641 = vrot.slane %v636, %v640
        %642 = vrot.lane.b32.xlu0 %v641, 8
        %v643 = vpop.permute.xlu0 %642
        %645 = vrot.lane.b32.xlu0 %v641, 16
        %v646 = vpop.permute.xlu0 %645
        %648 = vrot.lane.b32.xlu0 %v641, 24
        %v649 = vpop.permute.xlu0 %648
        %651 = vrot.lane.b32.xlu0 %v641, 32
        %v652 = vpop.permute.xlu0 %651
        %654 = vrot.lane.b32.xlu0 %v641, 40
        %v655 = vpop.permute.xlu0 %654
        %657 = vrot.lane.b32.xlu0 %v641, 48
        %v658 = vpop.permute.xlu0 %657
        %660 = vrot.lane.b32.xlu0 %v641, 56
        %v661 = vpop.permute.xlu0 %660
        %663 = vrot.lane.b32.xlu0 %v641, 64
        %v664 = vpop.permute.xlu0 %663
        %666 = vrot.lane.b32.xlu0 %v641, 72
        %v667 = vpop.permute.xlu0 %666
        %669 = vrot.lane.b32.xlu0 %v641, 80
        %v670 = vpop.permute.xlu0 %669
        %672 = vrot.lane.b32.xlu0 %v641, 88
        %v673 = vpop.permute.xlu0 %672
        %675 = vrot.lane.b32.xlu0 %v641, 96
        %v676 = vpop.permute.xlu0 %675
        %678 = vrot.lane.b32.xlu0 %v641, 104
        %v679 = vpop.permute.xlu0 %678
        %681 = vrot.lane.b32.xlu0 %v641, 112
        %v682 = vpop.permute.xlu0 %681
        %684 = vrot.lane.b32.xlu0 %v641, 120
        %v685 = vpop.permute.xlu0 %684
        %vm687 = vcmask 64512
        %v688 = vsel %vm687, %v636, %v643
        %vm689 = vcmask 130048
        %v690 = vsel %vm689, %v688, %v646
        %vm691 = vcmask 195584
        %v692 = vsel %vm691, %v690, %v649
        %vm693 = vcmask 261120
        %v694 = vsel %vm693, %v692, %v652
        %vm695 = vcmask 326656
        %v696 = vsel %vm695, %v694, %v655
        %vm697 = vcmask 392192
        %v698 = vsel %vm697, %v696, %v658
        %vm699 = vcmask 457728
        %v700 = vsel %vm699, %v698, %v661
        %vm701 = vcmask 523264
        %v702 = vsel %vm701, %v700, %v664
        %vm703 = vcmask 588800
        %v704 = vsel %vm703, %v702, %v667
        %vm705 = vcmask 654336
        %v706 = vsel %vm705, %v704, %v670
        %vm707 = vcmask 719872
        %v708 = vsel %vm707, %v706, %v673
        %vm709 = vcmask 785408
        %v710 = vsel %vm709, %v708, %v676
        %vm711 = vcmask 850944
        %v712 = vsel %vm711, %v710, %v679
        %vm713 = vcmask 916480
        %v714 = vsel %vm713, %v712, %v682
        %vm715 = vcmask 982016
        %v716 = vsel %vm715, %v714, %v685
        %v717 = vld [vmem:[#allocation2] sm:$0xff]
        %v718 = vld [vmem:[#allocation2 + $0x8] sm:$0xff]
        %v719 = vlaneseq
        %v720 = vshrl.u32 %v719, 7
        %v721 = vsub.s32 0, %v720
        %v722 = vrot.slane %v716, %v721
        %v723 = vsub.f32 %v717, %v722
        %v724 = vsub.f32 %v718, %v722
        %v725 = vmul.f32 %v723, %v723
        %v726 = vmul.f32 %v724, %v724
        %v727 = vadd.f32 %v725, %v726
        %v728 = vrot.slane %v727, 4
        %v729 = vadd.f32 %v727, %v728
        %v730 = vrot.slane %v729, 2
        %v731 = vadd.f32 %v729, %v730
        %v732 = vrot.slane %v731, 1
        %v733 = vadd.f32 %v731, %v732
        %v734 = vadd.f32 %v733, 0.0
        %s735 = scalar_lea.vmem [#allocation2], 16
        %v736 = vld [vmem:[%s735] sm:$0xff]
        %v737 = vld [vmem:[%s735 + $0x8] sm:$0xff]
        %v738 = vsub.f32 %v736, %v722
        %v739 = vsub.f32 %v737, %v722
        %v740 = vmul.f32 %v738, %v738
        %v741 = vmul.f32 %v739, %v739
        %v742 = vadd.f32 %v740, %v741
        %v743 = vrot.slane %v742, 4
        %v744 = vadd.f32 %v742, %v743
        %v745 = vrot.slane %v744, 2
        %v746 = vadd.f32 %v744, %v745
        %v747 = vrot.slane %v746, 1
        %v748 = vadd.f32 %v746, %v747
        %v749 = vadd.f32 %v734, %v748
        %751 = vrot.lane.b32.xlu0 %v749, 120
        %v752 = vpop.permute.xlu0 %751
        %v754 = vadd.f32 %v749, %v752
        %755 = vrot.lane.b32.xlu0 %v749, 112
        %v756 = vpop.permute.xlu0 %755
        %v758 = vadd.f32 %v754, %v756
        %759 = vrot.lane.b32.xlu0 %v749, 104
        %v760 = vpop.permute.xlu0 %759
        %v762 = vadd.f32 %v758, %v760
        %763 = vrot.lane.b32.xlu0 %v749, 96
        %v764 = vpop.permute.xlu0 %763
        %v766 = vadd.f32 %v762, %v764
        %767 = vrot.lane.b32.xlu0 %v749, 88
        %v768 = vpop.permute.xlu0 %767
        %v770 = vadd.f32 %v766, %v768
        %771 = vrot.lane.b32.xlu0 %v749, 80
        %v772 = vpop.permute.xlu0 %771
        %v774 = vadd.f32 %v770, %v772
        %775 = vrot.lane.b32.xlu0 %v749, 72
        %v776 = vpop.permute.xlu0 %775
        %v778 = vadd.f32 %v774, %v776
        %779 = vrot.lane.b32.xlu0 %v749, 64
        %v780 = vpop.permute.xlu0 %779
        %v782 = vadd.f32 %v778, %v780
        %783 = vrot.lane.b32.xlu0 %v749, 56
        %v784 = vpop.permute.xlu0 %783
        %v786 = vadd.f32 %v782, %v784
        %787 = vrot.lane.b32.xlu0 %v749, 48
        %v788 = vpop.permute.xlu0 %787
        %v790 = vadd.f32 %v786, %v788
        %791 = vrot.lane.b32.xlu0 %v749, 40
        %v792 = vpop.permute.xlu0 %791
        %v794 = vadd.f32 %v790, %v792
        %795 = vrot.lane.b32.xlu0 %v749, 32
        %v796 = vpop.permute.xlu0 %795
        %v798 = vadd.f32 %v794, %v796
        %799 = vrot.lane.b32.xlu0 %v749, 24
        %v800 = vpop.permute.xlu0 %799
        %v802 = vadd.f32 %v798, %v800
        %803 = vrot.lane.b32.xlu0 %v749, 16
        %v804 = vpop.permute.xlu0 %803
        %v806 = vadd.f32 %v802, %v804
        %807 = vrot.lane.b32.xlu0 %v749, 8
        %v808 = vpop.permute.xlu0 %807
        %v810 = vadd.f32 %v806, %v808
        %v811 = vmul.f32 %v810, %v635
        %v812 = vld [vmem:[%s3] sm:$0x1]
        %v813 = vadd.f32 %v811, 1e-05
        %v814 = vrsqrt.pop %v813
        %v815 = vmul.f32 %v812, %v814
        %v816 = vld [vmem:[%s4] sm:$0x1]
        %v817 = vmul.f32 %v636, %v815
        %v818 = vsub.f32 %v816, %v817
        %v820 = vlaneseq
        %v821 = vshrl.u32 %v820, 7
        %v822 = vsub.s32 0, %v821
        %v823 = vrot.slane %v815, %v822
        %824 = vrot.lane.b32.xlu0 %v823, 8
        %v825 = vpop.permute.xlu0 %824
        %827 = vrot.lane.b32.xlu0 %v823, 16
        %v828 = vpop.permute.xlu0 %827
        %830 = vrot.lane.b32.xlu0 %v823, 24
        %v831 = vpop.permute.xlu0 %830
        %833 = vrot.lane.b32.xlu0 %v823, 32
        %v834 = vpop.permute.xlu0 %833
        %836 = vrot.lane.b32.xlu0 %v823, 40
        %v837 = vpop.permute.xlu0 %836
        %839 = vrot.lane.b32.xlu0 %v823, 48
        %v840 = vpop.permute.xlu0 %839
        %842 = vrot.lane.b32.xlu0 %v823, 56
        %v843 = vpop.permute.xlu0 %842
        %845 = vrot.lane.b32.xlu0 %v823, 64
        %v846 = vpop.permute.xlu0 %845
        %848 = vrot.lane.b32.xlu0 %v823, 72
        %v849 = vpop.permute.xlu0 %848
        %851 = vrot.lane.b32.xlu0 %v823, 80
        %v852 = vpop.permute.xlu0 %851
        %854 = vrot.lane.b32.xlu0 %v823, 88
        %v855 = vpop.permute.xlu0 %854
        %857 = vrot.lane.b32.xlu0 %v823, 96
        %v858 = vpop.permute.xlu0 %857
        %860 = vrot.lane.b32.xlu0 %v823, 104
        %v861 = vpop.permute.xlu0 %860
        %863 = vrot.lane.b32.xlu0 %v823, 112
        %v864 = vpop.permute.xlu0 %863
        %866 = vrot.lane.b32.xlu0 %v823, 120
        %v867 = vpop.permute.xlu0 %866
        %v869 = vsel %vm687, %v815, %v825
        %v870 = vsel %vm689, %v869, %v828
        %v871 = vsel %vm691, %v870, %v831
        %v872 = vsel %vm693, %v871, %v834
        %v873 = vsel %vm695, %v872, %v837
        %v874 = vsel %vm697, %v873, %v840
        %v875 = vsel %vm699, %v874, %v843
        %v876 = vsel %vm701, %v875, %v846
        %v877 = vsel %vm703, %v876, %v849
        %v878 = vsel %vm705, %v877, %v852
        %v879 = vsel %vm707, %v878, %v855
        %v880 = vsel %vm709, %v879, %v858
        %v881 = vsel %vm711, %v880, %v861
        %v882 = vsel %vm713, %v881, %v864
        %v883 = vsel %vm715, %v882, %v867
        %884 = vst [vmem:[#allocation4] sm:$0x1] %v883
        %v886 = vlaneseq
        %v887 = vshrl.u32 %v886, 7
        %v888 = vsub.s32 0, %v887
        %v889 = vrot.slane %v818, %v888
        %890 = vrot.lane.b32.xlu0 %v889, 8
        %v891 = vpop.permute.xlu0 %890
        %893 = vrot.lane.b32.xlu0 %v889, 16
        %v894 = vpop.permute.xlu0 %893
        %896 = vrot.lane.b32.xlu0 %v889, 24
        %v897 = vpop.permute.xlu0 %896
        %899 = vrot.lane.b32.xlu0 %v889, 32
        %v900 = vpop.permute.xlu0 %899
        %902 = vrot.lane.b32.xlu0 %v889, 40
        %v903 = vpop.permute.xlu0 %902
        %905 = vrot.lane.b32.xlu0 %v889, 48
        %v906 = vpop.permute.xlu0 %905
        %908 = vrot.lane.b32.xlu0 %v889, 56
        %v909 = vpop.permute.xlu0 %908
        %911 = vrot.lane.b32.xlu0 %v889, 64
        %v912 = vpop.permute.xlu0 %911
        %914 = vrot.lane.b32.xlu0 %v889, 72
        %v915 = vpop.permute.xlu0 %914
        %917 = vrot.lane.b32.xlu0 %v889, 80
        %v918 = vpop.permute.xlu0 %917
        %920 = vrot.lane.b32.xlu0 %v889, 88
        %v921 = vpop.permute.xlu0 %920
        %923 = vrot.lane.b32.xlu0 %v889, 96
        %v924 = vpop.permute.xlu0 %923
        %926 = vrot.lane.b32.xlu0 %v889, 104
        %v927 = vpop.permute.xlu0 %926
        %929 = vrot.lane.b32.xlu0 %v889, 112
        %v930 = vpop.permute.xlu0 %929
        %932 = vrot.lane.b32.xlu0 %v889, 120
        %v933 = vpop.permute.xlu0 %932
        %v935 = vsel %vm687, %v818, %v891
        %v936 = vsel %vm689, %v935, %v894
        %v937 = vsel %vm691, %v936, %v897
        %v938 = vsel %vm693, %v937, %v900
        %v939 = vsel %vm695, %v938, %v903
        %v940 = vsel %vm697, %v939, %v906
        %v941 = vsel %vm699, %v940, %v909
        %v942 = vsel %vm701, %v941, %v912
        %v943 = vsel %vm703, %v942, %v915
        %v944 = vsel %vm705, %v943, %v918
        %v945 = vsel %vm707, %v944, %v921
        %v946 = vsel %vm709, %v945, %v924
        %v947 = vsel %vm711, %v946, %v927
        %v948 = vsel %vm713, %v947, %v930
        %v949 = vsel %vm715, %v948, %v933
        %950 = vst [vmem:[#allocation5] sm:$0x1] %v949
      $region52: #{conv_2d_forward.1} parent=39 // pred_fallthru
        _
      // Predicated region
      $region53: #{conv_2d_forward.1} parent=39 // pred_check
        %p951 = pneg %p567
      $region54: #{conv_2d_forward.1} parent=39 // pred_check_branch
        %953 = sbr.rel (%p951) target = $region56
      $region55: #{conv_2d_forward.1} parent=39 // pred_region
        %v954 = vld [vmem:[#allocation4] sm:$0x1]
        %v956 = vlaneseq
        %v957 = vshrl.u32 %v956, 7
        %v958 = vsub.s32 0, %v957
        %v959 = vrot.slane %v954, %v958
        %v961 = vld [vmem:[#allocation5] sm:$0x1]
        %v963 = vlaneseq
        %v964 = vshrl.u32 %v963, 7
        %v965 = vsub.s32 0, %v964
        %v966 = vrot.slane %v961, %v965
        %s968 = smul.u32 %s21, 16
        %s969 = scalar_lea.vmem [#allocation2], %s968
        %v970 = vld [vmem:[%s969] ss:$2 sm:$0xff]
        %v971 = vmul.f32 %v970, %v959
        %v972 = vadd.f32 %v971, %v966
        %s973 = scalar_lea.vmem %s969, 1 [#allocation2]
        %v974 = vld [vmem:[%s973] ss:$2 sm:$0xff]
        %v975 = vmul.f32 %v974, %v959
        %v976 = vadd.f32 %v975, %v966
        %v977 = vmax.f32 %v972, %v976
        %979 = vrot.lane.b32.xlu0 %v977, 64
        %v980 = vpop.permute.xlu0 %979
        %v982 = vmax.f32 %v977, %v980
        %v983 = vmax.f32 %v982, 0.0
        %vm984 = vcmask 523264
        %985 = vst.msk [vmem:[%s252] sm:$0xff] %vm984, %v983
      $region56: #{conv_2d_forward.1} parent=39 // pred_fallthru
        _
      %s986 = smul.u32 %s20, %s21
      %p987 = scmp.lt.s32.totalorder %s986, 1
      %s988 = scalar_select %p987, %s986, 1
      %s989 = smul.addr %s988, 8
      %s990 = scalar_lea.vmem %s5, %s989
      // Predicated region
      $region57: #{conv_2d_forward.1} parent=39 // pred_check
        %p991 = pneg %p162
      $region58: #{conv_2d_forward.1} parent=39 // pred_check_branch
        %993 = sbr.rel (%p991) target = $region60
      $region59: #{conv_2d_forward.1} parent=39 // pred_region
        %s994 = smul.u32 %s20, %s21
      $region60: #{conv_2d_forward.1} parent=39 // pred_fallthru
        _
    $region40: #{conv_2d_forward.1} parent=5 // pred_fallthru
      _
    %p995 = scmp.le.s32.totalorder 2, %s11
    // Predicated region
    $region61: #{conv_2d_forward.1} parent=5 // pred_check
      %p996 = pneg %p995
    $region62: #{conv_2d_forward.1} parent=5 // pred_check_branch
      %998 = sbr.rel (%p996) target = $region64
    $region63: #{conv_2d_forward.1} parent=5 // pred_region
      %s999 = ssub.s32 %s11, 2
      // Predicated region
      $region65: #{conv_2d_forward.1} parent=63 // pred_check
        %p1000 = pneg %p168
      $region66: #{conv_2d_forward.1} parent=63 // pred_check_branch
        %1002 = sbr.rel (%p1000) target = $region68
      $region67: #{conv_2d_forward.1} parent=63 // pred_region
        %s1003 = smul.u32 %s22, %s23
        %p1004 = scmp.lt.s32.totalorder %s1003, 1
        %s1005 = scalar_select %p1004, %s1003, 1
        %s1006 = smul.addr %s1005, 8
        %s1007 = scalar_lea.vmem %s5, %s1006
      $region68: #{conv_2d_forward.1} parent=63 // pred_fallthru
        _
    $region64: #{conv_2d_forward.1} parent=5 // pred_fallthru
      _
  $region6: #{conv_2d_forward.1} parent=0 // loop_footer
    %s15 = sadd.s32 1, %s11
  $region7: #{conv_2d_forward.1} parent=0 // loop_footer_branch
    %10 = sbr.rel target = $region3
  $region8: #{conv_2d_forward.1} parent=0 // loop_exit
    _

</llo_original>
